<compile_context>
chip_gen: v5e
topology: v5e:2x2
jax: 0.10.0
libtpu: 0.0.40
codegen_flags: <defaults>
</compile_context>

<pallas_src>
import functools

import jax
import jax.numpy as jnp
from jax.experimental import pallas as pl
from jax.experimental.pallas import tpu as pltpu


def bilstm_fc_kernel(emb_ref,     # (T, Bt, 2E) f32, row (t,b) = [x_t(b) | x_{T-1-t}(b)]
                     wi_ref,      # (2E, 8H)    bf16, block-diag, cols [i_f i_b f_f f_b o_f o_b g_f g_b]
                     b_ref,       # (1, 8H)     f32, fused biases in the same column order
                     wh_ref,      # (2H, 8H)    bf16, block-diag recurrent weights
                     fcw_ref,     # (2H, O_pad) bf16, original fc weight (rows [fwd | bwd])
                     fcb_ref,     # (1, O_pad)  f32
                     out_ref,     # (Bt, O_pad) f32
                     xw_ref,      # (T, Bt, 8H) f32 VMEM scratch: hoisted input projection
                     *, seq_len, hidden):
    T = seq_len
    H2 = 2 * hidden                  # fused per-gate width: [fwd | bwd]
    Bt = emb_ref.shape[1]

    wi = wi_ref[...]
    wh = wh_ref[...]
    bias = b_ref[...]

    # Hoisted dual-direction input projection (off the serial critical path), biases folded
    # in once.  Written to VMEM scratch so the recurrence below reads fixed, aligned
    # (Bt, 8H) tiles and live ranges stay bounded across the fully unrolled loop.
    for t in range(T):
        xw_ref[t] = jnp.dot(emb_ref[t].astype(jnp.bfloat16), wi,
                            preferred_element_type=jnp.float32) + bias

    h = jnp.zeros((Bt, H2), jnp.float32)     # [h_fwd | h_bwd]
    c = jnp.zeros((Bt, H2), jnp.float32)     # [c_fwd | c_bwd]

    # Fully unrolled recurrence (T is a compile-time constant): one (Bt,2H)@(2H,8H) MXU dot
    # and two EUP launches per step cover BOTH directions.
    for t in range(T):
        gates = xw_ref[t] + jnp.dot(h.astype(jnp.bfloat16), wh,
                                    preferred_element_type=jnp.float32)     # (Bt, 8H) f32
        sig = jax.nn.sigmoid(gates[:, :3 * H2])      # [i | f | o] — one sigmoid launch
        g = jnp.tanh(gates[:, 3 * H2:])              # [g]         — one tanh launch
        i_g = sig[:, 0 * H2:1 * H2]
        f_g = sig[:, 1 * H2:2 * H2]
        o_g = sig[:, 2 * H2:3 * H2]
        c = f_g * c + i_g * g
        h = o_g * jnp.tanh(c)

    # h == [h_fwd | h_bwd] == torch.cat((hn[-2], hn[-1]), dim=1); dropout is identity at
    # inference.  Output is lane-dense (O padded to 128).
    out_ref[...] = jnp.dot(h.astype(jnp.bfloat16), fcw_ref[...],
                           preferred_element_type=jnp.float32) + fcb_ref[...]


def text_classification_forward(x_tokens, params):
    """x_tokens: (B, T) int32 token ids. Returns (B, output_dim) f32 logits."""
    emb_table = params["embedding"]                  # (V, E)
    B, T = x_tokens.shape
    E = emb_table.shape[1]
    H = params["wh_f"].shape[0]
    O = params["fc_w"].shape[1]

    Bt = 8                                           # sublane-aligned batch tile
    Bp = ((B + Bt - 1) // Bt) * Bt
    O_pad = ((O + 127) // 128) * 128

    # --- embedding glue (plain JAX): gather directly in time-major order ---
    emb_tbe = emb_table[x_tokens.T]                  # (T, B, E), no explicit transpose
    emb_tbe = jnp.pad(emb_tbe, ((0, 0), (0, Bp - B), (0, 0)))
    # Row (t, b) = [x_t(b) | x_{T-1-t}(b)] so the block-diagonal Wi produces both
    # directions' input projections for step t in one contiguous (Bt, 8H) slice.
    emb_cat = jnp.concatenate([emb_tbe, emb_tbe[::-1]], axis=-1)      # (T, Bp, 2E) f32

    # --- weight repacking: PyTorch gate order [i,f,g,o] -> [i,f,o,g]; directions
    #     interleaved per gate block; recurrent / input weights made block-diagonal ---
    def reorder(w):     # (..., 4H) [i,f,g,o] -> [i,f,o,g]
        return jnp.concatenate(
            [w[..., 0:H], w[..., H:2 * H], w[..., 3 * H:4 * H], w[..., 2 * H:3 * H]], axis=-1)

    def interleave(wf, wb):   # two (..., 4H) -> (..., 8H) [i_f i_b f_f f_b o_f o_b g_f g_b]
        parts = []
        for k in range(4):
            parts += [wf[..., k * H:(k + 1) * H], wb[..., k * H:(k + 1) * H]]
        return jnp.concatenate(parts, axis=-1)

    wi_f, wi_b = reorder(params["wi_f"]), reorder(params["wi_b"])
    wh_f, wh_b = reorder(params["wh_f"]), reorder(params["wh_b"])
    b_f, b_b = reorder(params["b_f"]), reorder(params["b_b"])

    zE = jnp.zeros_like(wi_f)
    wi_cat = jnp.concatenate([interleave(wi_f, zE), interleave(zE, wi_b)], axis=0)  # (2E, 8H)
    zH = jnp.zeros_like(wh_f)
    wh_cat = jnp.concatenate([interleave(wh_f, zH), interleave(zH, wh_b)], axis=0)  # (2H, 8H)
    b_cat = interleave(b_f, b_b)                                                    # (1, 8H)

    fc_w = jnp.pad(params["fc_w"], ((0, 0), (0, O_pad - O)))        # (2H, O_pad)
    fc_b = jnp.pad(params["fc_b"], ((0, 0), (0, O_pad - O)))        # (1, O_pad)

    # bf16 MXU operands; all dots accumulate in f32 inside the kernel.
    wi_cat = wi_cat.astype(jnp.bfloat16)
    wh_cat = wh_cat.astype(jnp.bfloat16)
    fc_w = fc_w.astype(jnp.bfloat16)

    kernel = functools.partial(bilstm_fc_kernel, seq_len=T, hidden=H)
    out_padded = pl.pallas_call(
        kernel,
        out_shape=jax.ShapeDtypeStruct((Bp, O_pad), jnp.float32),
        grid=(Bp // Bt,),
        in_specs=[
            pl.BlockSpec((T, Bt, 2 * E), lambda b: (0, b, 0)),      # per-batch-tile embeddings
            pl.BlockSpec((2 * E, 8 * H), lambda b: (0, 0)),         # Wi (shared)
            pl.BlockSpec((1, 8 * H), lambda b: (0, 0)),             # bias (shared)
            pl.BlockSpec((2 * H, 8 * H), lambda b: (0, 0)),         # Wh (shared)
            pl.BlockSpec((2 * H, O_pad), lambda b: (0, 0)),         # fc_w (shared)
            pl.BlockSpec((1, O_pad), lambda b: (0, 0)),             # fc_b (shared)
        ],
        out_specs=pl.BlockSpec((Bt, O_pad), lambda b: (b, 0)),
        scratch_shapes=[pltpu.VMEM((T, Bt, 8 * H), jnp.float32)],
        compiler_params=pltpu.CompilerParams(dimension_semantics=("parallel",)),
    )(emb_cat, wi_cat, b_cat, wh_cat, fc_w, fc_b)

    return out_padded[:B, :O]


def reference_forward(x_tokens, params):
    """Pure-JAX f32 reference with the original per-direction math (correctness check)."""
    emb = params["embedding"][x_tokens]              # (B, T, E)
    B, T, _ = emb.shape
    H = params["wh_f"].shape[0]

    def cell(x_t, h, c, wi, wh, b):
        gates = x_t @ wi + h @ wh + b                # (B, 4H), PyTorch gate order [i,f,g,o]
        i_g = jax.nn.sigmoid(gates[:, 0 * H:1 * H])
        f_g = jax.nn.sigmoid(gates[:, 1 * H:2 * H])
        g_g = jnp.tanh(gates[:, 2 * H:3 * H])
        o_g = jax.nn.sigmoid(gates[:, 3 * H:4 * H])
        c_new = f_g * c + i_g * g_g
        return o_g * jnp.tanh(c_new), c_new

    h_f = c_f = h_b = c_b = jnp.zeros((B, H), jnp.float32)
    for t in range(T):
        h_f, c_f = cell(emb[:, t, :], h_f, c_f,
                        params["wi_f"], params["wh_f"], params["b_f"])
        h_b, c_b = cell(emb[:, T - 1 - t, :], h_b, c_b,
                        params["wi_b"], params["wh_b"], params["b_b"])
    h_cat = jnp.concatenate([h_f, h_b], axis=1)      # hn[-2] ++ hn[-1]
    return h_cat @ params["fc_w"] + params["fc_b"]


def init_params(key, vocab_size, embed_dim, hidden_dim, output_dim):
    ks = jax.random.split(key, 9)
    s = 0.1
    E, H, O = embed_dim, hidden_dim, output_dim
    return {
        "embedding": jax.random.normal(ks[0], (vocab_size, E), jnp.float32) * s,
        # forward direction, gates fused along last axis in PyTorch order [i, f, g, o];
        # biases are b_ih + b_hh already folded into one vector per direction.
        "wi_f": jax.random.normal(ks[1], (E, 4 * H), jnp.float32) * s,
        "wh_f": jax.random.normal(ks[2], (H, 4 * H), jnp.float32) * s,
        "b_f": jax.random.normal(ks[3], (1, 4 * H), jnp.float32) * s,
        # backward direction
        "wi_b": jax.random.normal(ks[4], (E, 4 * H), jnp.float32) * s,
        "wh_b": jax.random.normal(ks[5], (H, 4 * H), jnp.float32) * s,
        "b_b": jax.random.normal(ks[6], (1, 4 * H), jnp.float32) * s,
        # classifier head: (2H -> O)
        "fc_w": jax.random.normal(ks[7], (2 * H, O), jnp.float32) * s,
        "fc_b": jax.random.normal(ks[8], (1, O), jnp.float32) * s,
    }


if __name__ == "__main__":
    # Small shapes consistent with the module's forward.
    VOCAB, EMBED, HIDDEN, OUT = 50, 32, 32, 15
    B, T = 2, 8

    key = jax.random.PRNGKey(0)
    k_params, k_tokens = jax.random.split(key)
    params = init_params(k_params, VOCAB, EMBED, HIDDEN, OUT)
    x_tokens = jax.random.randint(k_tokens, (B, T), 0, VOCAB, dtype=jnp.int32)

    # TODO(synk): nn.Dropout(0.5) is a no-op at inference; training-mode dropout not implemented.
    out = text_classification_forward(x_tokens, params)
    out = jax.block_until_ready(out)

    ref = reference_forward(x_tokens, params)
    assert out.shape == (B, OUT)
    # bf16 MXU operands vs. f32 reference -> loosened tolerance (review correctness note).
    assert jnp.allclose(out, ref, atol=2e-2, rtol=2e-2), (
        "mismatch vs reference: max abs diff = %g" % float(jnp.max(jnp.abs(out - ref))))

    print("KERNEL_OK")
</pallas_src>

<mosaic_0001>
module attributes {stable_mosaic.version = 11 : i64} {
  func.func @bilstm_fc_kernel(%arg0: i32, %arg1: memref<8x8x64xf32, #tpu.memory_space<vmem>>, %arg2: memref<64x256xbf16, #tpu.memory_space<vmem>>, %arg3: memref<1x256xf32, #tpu.memory_space<vmem>>, %arg4: memref<64x256xbf16, #tpu.memory_space<vmem>>, %arg5: memref<64x128xbf16, #tpu.memory_space<vmem>>, %arg6: memref<1x128xf32, #tpu.memory_space<vmem>>, %arg7: memref<8x128xf32, #tpu.memory_space<vmem>>, %arg8: memref<8x8x256xf32, #tpu.memory_space<vmem>>) attributes {dimension_semantics = [#tpu.dimension_semantics<parallel>], iteration_bounds = array<i64: 1>, scalar_prefetch = 0 : i64, scratch_operands = 1 : i64, tpu.core_type = #tpu.core_type<tc>, window_params = [{transform_indices = @transform_0, window_bounds = array<i64: 8, 8, 64>}, {pipeline_mode = #tpu.pipeline_mode<synchronous>, transform_indices = @transform_1, window_bounds = array<i64: 64, 256>}, {pipeline_mode = #tpu.pipeline_mode<synchronous>, transform_indices = @transform_2, window_bounds = array<i64: 1, 256>}, {pipeline_mode = #tpu.pipeline_mode<synchronous>, transform_indices = @transform_3, window_bounds = array<i64: 64, 256>}, {pipeline_mode = #tpu.pipeline_mode<synchronous>, transform_indices = @transform_4, window_bounds = array<i64: 64, 128>}, {pipeline_mode = #tpu.pipeline_mode<synchronous>, transform_indices = @transform_5, window_bounds = array<i64: 1, 128>}, {transform_indices = @transform_6, window_bounds = array<i64: 8, 128>}]} {
    %c0 = arith.constant 0 : index
    %c0_0 = arith.constant 0 : index
    %0 = vector.load %arg2[%c0, %c0_0] : memref<64x256xbf16, #tpu.memory_space<vmem>>, vector<64x256xbf16>
    %c0_1 = arith.constant 0 : index
    %c0_2 = arith.constant 0 : index
    %1 = vector.load %arg4[%c0_1, %c0_2] : memref<64x256xbf16, #tpu.memory_space<vmem>>, vector<64x256xbf16>
    %c0_3 = arith.constant 0 : index
    %c0_4 = arith.constant 0 : index
    %2 = vector.load %arg3[%c0_3, %c0_4] : memref<1x256xf32, #tpu.memory_space<vmem>>, vector<1x256xf32>
    %c0_5 = arith.constant 0 : index
    %c0_6 = arith.constant 0 : index
    %c0_7 = arith.constant 0 : index
    %3 = vector.load %arg1[%c0_5, %c0_6, %c0_7] : memref<8x8x64xf32, #tpu.memory_space<vmem>>, vector<1x8x64xf32>
    %4 = vector.shape_cast %3 : vector<1x8x64xf32> to vector<8x64xf32>
    %5 = arith.truncf %4 : vector<8x64xf32> to vector<8x64xbf16>
    %cst = arith.constant dense<0.000000e+00> : vector<8x256xf32>
    %6 = tpu.matmul %5, %0, %cst {dimension_numbers = #tpu.dot_dimension_numbers<[1], [0], [0], [1], [0, 0, 1, 1], [], []>} : vector<8x64xbf16>, vector<64x256xbf16>, vector<8x256xf32> -> vector<8x256xf32>
    %7 = vector.broadcast %2 : vector<1x256xf32> to vector<8x256xf32>
    %8 = arith.addf %6, %7 : vector<8x256xf32>
    %c0_8 = arith.constant 0 : index
    %c0_9 = arith.constant 0 : index
    %c0_10 = arith.constant 0 : index
    %9 = vector.load %arg8[%c0_8, %c0_9, %c0_10] : memref<8x8x256xf32, #tpu.memory_space<vmem>>, vector<1x8x256xf32>
    %10 = vector.shape_cast %9 : vector<1x8x256xf32> to vector<8x256xf32>
    %11 = vector.shape_cast %8 : vector<8x256xf32> to vector<1x8x256xf32>
    tpu.vector_store %arg8[%c0_8, %c0_9, %c0_10], %11 {strides = array<i32>} : memref<8x8x256xf32, #tpu.memory_space<vmem>>, vector<1x8x256xf32>,
    %c1 = arith.constant 1 : index
    %c0_11 = arith.constant 0 : index
    %c0_12 = arith.constant 0 : index
    %12 = vector.load %arg1[%c1, %c0_11, %c0_12] : memref<8x8x64xf32, #tpu.memory_space<vmem>>, vector<1x8x64xf32>
    %13 = vector.shape_cast %12 : vector<1x8x64xf32> to vector<8x64xf32>
    %14 = arith.truncf %13 : vector<8x64xf32> to vector<8x64xbf16>
    %cst_13 = arith.constant dense<0.000000e+00> : vector<8x256xf32>
    %15 = tpu.matmul %14, %0, %cst_13 {dimension_numbers = #tpu.dot_dimension_numbers<[1], [0], [0], [1], [0, 0, 1, 1], [], []>} : vector<8x64xbf16>, vector<64x256xbf16>, vector<8x256xf32> -> vector<8x256xf32>
    %16 = vector.broadcast %2 : vector<1x256xf32> to vector<8x256xf32>
    %17 = arith.addf %15, %16 : vector<8x256xf32>
    %c1_14 = arith.constant 1 : index
    %c0_15 = arith.constant 0 : index
    %c0_16 = arith.constant 0 : index
    %18 = vector.load %arg8[%c1_14, %c0_15, %c0_16] : memref<8x8x256xf32, #tpu.memory_space<vmem>>, vector<1x8x256xf32>
    %19 = vector.shape_cast %18 : vector<1x8x256xf32> to vector<8x256xf32>
    %20 = vector.shape_cast %17 : vector<8x256xf32> to vector<1x8x256xf32>
    tpu.vector_store %arg8[%c1_14, %c0_15, %c0_16], %20 {strides = array<i32>} : memref<8x8x256xf32, #tpu.memory_space<vmem>>, vector<1x8x256xf32>,
    %c2 = arith.constant 2 : index
    %c0_17 = arith.constant 0 : index
    %c0_18 = arith.constant 0 : index
    %21 = vector.load %arg1[%c2, %c0_17, %c0_18] : memref<8x8x64xf32, #tpu.memory_space<vmem>>, vector<1x8x64xf32>
    %22 = vector.shape_cast %21 : vector<1x8x64xf32> to vector<8x64xf32>
    %23 = arith.truncf %22 : vector<8x64xf32> to vector<8x64xbf16>
    %cst_19 = arith.constant dense<0.000000e+00> : vector<8x256xf32>
    %24 = tpu.matmul %23, %0, %cst_19 {dimension_numbers = #tpu.dot_dimension_numbers<[1], [0], [0], [1], [0, 0, 1, 1], [], []>} : vector<8x64xbf16>, vector<64x256xbf16>, vector<8x256xf32> -> vector<8x256xf32>
    %25 = vector.broadcast %2 : vector<1x256xf32> to vector<8x256xf32>
    %26 = arith.addf %24, %25 : vector<8x256xf32>
    %c2_20 = arith.constant 2 : index
    %c0_21 = arith.constant 0 : index
    %c0_22 = arith.constant 0 : index
    %27 = vector.load %arg8[%c2_20, %c0_21, %c0_22] : memref<8x8x256xf32, #tpu.memory_space<vmem>>, vector<1x8x256xf32>
    %28 = vector.shape_cast %27 : vector<1x8x256xf32> to vector<8x256xf32>
    %29 = vector.shape_cast %26 : vector<8x256xf32> to vector<1x8x256xf32>
    tpu.vector_store %arg8[%c2_20, %c0_21, %c0_22], %29 {strides = array<i32>} : memref<8x8x256xf32, #tpu.memory_space<vmem>>, vector<1x8x256xf32>,
    %c3 = arith.constant 3 : index
    %c0_23 = arith.constant 0 : index
    %c0_24 = arith.constant 0 : index
    %30 = vector.load %arg1[%c3, %c0_23, %c0_24] : memref<8x8x64xf32, #tpu.memory_space<vmem>>, vector<1x8x64xf32>
    %31 = vector.shape_cast %30 : vector<1x8x64xf32> to vector<8x64xf32>
    %32 = arith.truncf %31 : vector<8x64xf32> to vector<8x64xbf16>
    %cst_25 = arith.constant dense<0.000000e+00> : vector<8x256xf32>
    %33 = tpu.matmul %32, %0, %cst_25 {dimension_numbers = #tpu.dot_dimension_numbers<[1], [0], [0], [1], [0, 0, 1, 1], [], []>} : vector<8x64xbf16>, vector<64x256xbf16>, vector<8x256xf32> -> vector<8x256xf32>
    %34 = vector.broadcast %2 : vector<1x256xf32> to vector<8x256xf32>
    %35 = arith.addf %33, %34 : vector<8x256xf32>
    %c3_26 = arith.constant 3 : index
    %c0_27 = arith.constant 0 : index
    %c0_28 = arith.constant 0 : index
    %36 = vector.load %arg8[%c3_26, %c0_27, %c0_28] : memref<8x8x256xf32, #tpu.memory_space<vmem>>, vector<1x8x256xf32>
    %37 = vector.shape_cast %36 : vector<1x8x256xf32> to vector<8x256xf32>
    %38 = vector.shape_cast %35 : vector<8x256xf32> to vector<1x8x256xf32>
    tpu.vector_store %arg8[%c3_26, %c0_27, %c0_28], %38 {strides = array<i32>} : memref<8x8x256xf32, #tpu.memory_space<vmem>>, vector<1x8x256xf32>,
    %c4 = arith.constant 4 : index
    %c0_29 = arith.constant 0 : index
    %c0_30 = arith.constant 0 : index
    %39 = vector.load %arg1[%c4, %c0_29, %c0_30] : memref<8x8x64xf32, #tpu.memory_space<vmem>>, vector<1x8x64xf32>
    %40 = vector.shape_cast %39 : vector<1x8x64xf32> to vector<8x64xf32>
    %41 = arith.truncf %40 : vector<8x64xf32> to vector<8x64xbf16>
    %cst_31 = arith.constant dense<0.000000e+00> : vector<8x256xf32>
    %42 = tpu.matmul %41, %0, %cst_31 {dimension_numbers = #tpu.dot_dimension_numbers<[1], [0], [0], [1], [0, 0, 1, 1], [], []>} : vector<8x64xbf16>, vector<64x256xbf16>, vector<8x256xf32> -> vector<8x256xf32>
    %43 = vector.broadcast %2 : vector<1x256xf32> to vector<8x256xf32>
    %44 = arith.addf %42, %43 : vector<8x256xf32>
    %c4_32 = arith.constant 4 : index
    %c0_33 = arith.constant 0 : index
    %c0_34 = arith.constant 0 : index
    %45 = vector.load %arg8[%c4_32, %c0_33, %c0_34] : memref<8x8x256xf32, #tpu.memory_space<vmem>>, vector<1x8x256xf32>
    %46 = vector.shape_cast %45 : vector<1x8x256xf32> to vector<8x256xf32>
    %47 = vector.shape_cast %44 : vector<8x256xf32> to vector<1x8x256xf32>
    tpu.vector_store %arg8[%c4_32, %c0_33, %c0_34], %47 {strides = array<i32>} : memref<8x8x256xf32, #tpu.memory_space<vmem>>, vector<1x8x256xf32>,
    %c5 = arith.constant 5 : index
    %c0_35 = arith.constant 0 : index
    %c0_36 = arith.constant 0 : index
    %48 = vector.load %arg1[%c5, %c0_35, %c0_36] : memref<8x8x64xf32, #tpu.memory_space<vmem>>, vector<1x8x64xf32>
    %49 = vector.shape_cast %48 : vector<1x8x64xf32> to vector<8x64xf32>
    %50 = arith.truncf %49 : vector<8x64xf32> to vector<8x64xbf16>
    %cst_37 = arith.constant dense<0.000000e+00> : vector<8x256xf32>
    %51 = tpu.matmul %50, %0, %cst_37 {dimension_numbers = #tpu.dot_dimension_numbers<[1], [0], [0], [1], [0, 0, 1, 1], [], []>} : vector<8x64xbf16>, vector<64x256xbf16>, vector<8x256xf32> -> vector<8x256xf32>
    %52 = vector.broadcast %2 : vector<1x256xf32> to vector<8x256xf32>
    %53 = arith.addf %51, %52 : vector<8x256xf32>
    %c5_38 = arith.constant 5 : index
    %c0_39 = arith.constant 0 : index
    %c0_40 = arith.constant 0 : index
    %54 = vector.load %arg8[%c5_38, %c0_39, %c0_40] : memref<8x8x256xf32, #tpu.memory_space<vmem>>, vector<1x8x256xf32>
    %55 = vector.shape_cast %54 : vector<1x8x256xf32> to vector<8x256xf32>
    %56 = vector.shape_cast %53 : vector<8x256xf32> to vector<1x8x256xf32>
    tpu.vector_store %arg8[%c5_38, %c0_39, %c0_40], %56 {strides = array<i32>} : memref<8x8x256xf32, #tpu.memory_space<vmem>>, vector<1x8x256xf32>,
    %c6 = arith.constant 6 : index
    %c0_41 = arith.constant 0 : index
    %c0_42 = arith.constant 0 : index
    %57 = vector.load %arg1[%c6, %c0_41, %c0_42] : memref<8x8x64xf32, #tpu.memory_space<vmem>>, vector<1x8x64xf32>
    %58 = vector.shape_cast %57 : vector<1x8x64xf32> to vector<8x64xf32>
    %59 = arith.truncf %58 : vector<8x64xf32> to vector<8x64xbf16>
    %cst_43 = arith.constant dense<0.000000e+00> : vector<8x256xf32>
    %60 = tpu.matmul %59, %0, %cst_43 {dimension_numbers = #tpu.dot_dimension_numbers<[1], [0], [0], [1], [0, 0, 1, 1], [], []>} : vector<8x64xbf16>, vector<64x256xbf16>, vector<8x256xf32> -> vector<8x256xf32>
    %61 = vector.broadcast %2 : vector<1x256xf32> to vector<8x256xf32>
    %62 = arith.addf %60, %61 : vector<8x256xf32>
    %c6_44 = arith.constant 6 : index
    %c0_45 = arith.constant 0 : index
    %c0_46 = arith.constant 0 : index
    %63 = vector.load %arg8[%c6_44, %c0_45, %c0_46] : memref<8x8x256xf32, #tpu.memory_space<vmem>>, vector<1x8x256xf32>
    %64 = vector.shape_cast %63 : vector<1x8x256xf32> to vector<8x256xf32>
    %65 = vector.shape_cast %62 : vector<8x256xf32> to vector<1x8x256xf32>
    tpu.vector_store %arg8[%c6_44, %c0_45, %c0_46], %65 {strides = array<i32>} : memref<8x8x256xf32, #tpu.memory_space<vmem>>, vector<1x8x256xf32>,
    %c7 = arith.constant 7 : index
    %c0_47 = arith.constant 0 : index
    %c0_48 = arith.constant 0 : index
    %66 = vector.load %arg1[%c7, %c0_47, %c0_48] : memref<8x8x64xf32, #tpu.memory_space<vmem>>, vector<1x8x64xf32>
    %67 = vector.shape_cast %66 : vector<1x8x64xf32> to vector<8x64xf32>
    %68 = arith.truncf %67 : vector<8x64xf32> to vector<8x64xbf16>
    %cst_49 = arith.constant dense<0.000000e+00> : vector<8x256xf32>
    %69 = tpu.matmul %68, %0, %cst_49 {dimension_numbers = #tpu.dot_dimension_numbers<[1], [0], [0], [1], [0, 0, 1, 1], [], []>} : vector<8x64xbf16>, vector<64x256xbf16>, vector<8x256xf32> -> vector<8x256xf32>
    %70 = vector.broadcast %2 : vector<1x256xf32> to vector<8x256xf32>
    %71 = arith.addf %69, %70 : vector<8x256xf32>
    %c7_50 = arith.constant 7 : index
    %c0_51 = arith.constant 0 : index
    %c0_52 = arith.constant 0 : index
    %72 = vector.load %arg8[%c7_50, %c0_51, %c0_52] : memref<8x8x256xf32, #tpu.memory_space<vmem>>, vector<1x8x256xf32>
    %73 = vector.shape_cast %72 : vector<1x8x256xf32> to vector<8x256xf32>
    %74 = vector.shape_cast %71 : vector<8x256xf32> to vector<1x8x256xf32>
    tpu.vector_store %arg8[%c7_50, %c0_51, %c0_52], %74 {strides = array<i32>} : memref<8x8x256xf32, #tpu.memory_space<vmem>>, vector<1x8x256xf32>,
    %cst_53 = arith.constant 0.000000e+00 : f32
    %75 = vector.broadcast %cst_53 : f32 to vector<8x64xf32>
    %cst_54 = arith.constant 0.000000e+00 : f32
    %76 = vector.broadcast %cst_54 : f32 to vector<8x64xf32>
    %c0_55 = arith.constant 0 : index
    %c0_56 = arith.constant 0 : index
    %c0_57 = arith.constant 0 : index
    %77 = vector.load %arg8[%c0_55, %c0_56, %c0_57] : memref<8x8x256xf32, #tpu.memory_space<vmem>>, vector<1x8x256xf32>
    %78 = vector.shape_cast %77 : vector<1x8x256xf32> to vector<8x256xf32>
    %79 = arith.truncf %75 : vector<8x64xf32> to vector<8x64xbf16>
    %cst_58 = arith.constant dense<0.000000e+00> : vector<8x256xf32>
    %80 = tpu.matmul %79, %1, %cst_58 {dimension_numbers = #tpu.dot_dimension_numbers<[1], [0], [0], [1], [0, 0, 1, 1], [], []>} : vector<8x64xbf16>, vector<64x256xbf16>, vector<8x256xf32> -> vector<8x256xf32>
    %81 = arith.addf %78, %80 : vector<8x256xf32>
    %82 = vector.extract_strided_slice %81 {offsets = [0, 0], sizes = [8, 192], strides = [1, 1]} : vector<8x256xf32> to vector<8x192xf32>
    %83 = arith.negf %82 : vector<8x192xf32>
    %84 = math.exp %83 : vector<8x192xf32>
    %cst_59 = arith.constant 1.000000e+00 : f32
    %85 = vector.broadcast %cst_59 : f32 to vector<8x192xf32>
    %86 = arith.addf %85, %84 : vector<8x192xf32>
    %87 = arith.divf %85, %86 : vector<8x192xf32>
    %88 = vector.extract_strided_slice %81 {offsets = [0, 192], sizes = [8, 64], strides = [1, 1]} : vector<8x256xf32> to vector<8x64xf32>
    %89 = math.tanh %88 : vector<8x64xf32>
    %90 = vector.extract_strided_slice %87 {offsets = [0, 0], sizes = [8, 64], strides = [1, 1]} : vector<8x192xf32> to vector<8x64xf32>
    %91 = vector.extract_strided_slice %87 {offsets = [0, 64], sizes = [8, 64], strides = [1, 1]} : vector<8x192xf32> to vector<8x64xf32>
    %92 = vector.extract_strided_slice %87 {offsets = [0, 128], sizes = [8, 64], strides = [1, 1]} : vector<8x192xf32> to vector<8x64xf32>
    %93 = arith.mulf %91, %76 : vector<8x64xf32>
    %94 = arith.mulf %90, %89 : vector<8x64xf32>
    %95 = arith.addf %93, %94 : vector<8x64xf32>
    %96 = math.tanh %95 : vector<8x64xf32>
    %97 = arith.mulf %92, %96 : vector<8x64xf32>
    %c1_60 = arith.constant 1 : index
    %c0_61 = arith.constant 0 : index
    %c0_62 = arith.constant 0 : index
    %98 = vector.load %arg8[%c1_60, %c0_61, %c0_62] : memref<8x8x256xf32, #tpu.memory_space<vmem>>, vector<1x8x256xf32>
    %99 = vector.shape_cast %98 : vector<1x8x256xf32> to vector<8x256xf32>
    %100 = arith.truncf %97 : vector<8x64xf32> to vector<8x64xbf16>
    %cst_63 = arith.constant dense<0.000000e+00> : vector<8x256xf32>
    %101 = tpu.matmul %100, %1, %cst_63 {dimension_numbers = #tpu.dot_dimension_numbers<[1], [0], [0], [1], [0, 0, 1, 1], [], []>} : vector<8x64xbf16>, vector<64x256xbf16>, vector<8x256xf32> -> vector<8x256xf32>
    %102 = arith.addf %99, %101 : vector<8x256xf32>
    %103 = vector.extract_strided_slice %102 {offsets = [0, 0], sizes = [8, 192], strides = [1, 1]} : vector<8x256xf32> to vector<8x192xf32>
    %104 = arith.negf %103 : vector<8x192xf32>
    %105 = math.exp %104 : vector<8x192xf32>
    %cst_64 = arith.constant 1.000000e+00 : f32
    %106 = vector.broadcast %cst_64 : f32 to vector<8x192xf32>
    %107 = arith.addf %106, %105 : vector<8x192xf32>
    %108 = arith.divf %106, %107 : vector<8x192xf32>
    %109 = vector.extract_strided_slice %102 {offsets = [0, 192], sizes = [8, 64], strides = [1, 1]} : vector<8x256xf32> to vector<8x64xf32>
    %110 = math.tanh %109 : vector<8x64xf32>
    %111 = vector.extract_strided_slice %108 {offsets = [0, 0], sizes = [8, 64], strides = [1, 1]} : vector<8x192xf32> to vector<8x64xf32>
    %112 = vector.extract_strided_slice %108 {offsets = [0, 64], sizes = [8, 64], strides = [1, 1]} : vector<8x192xf32> to vector<8x64xf32>
    %113 = vector.extract_strided_slice %108 {offsets = [0, 128], sizes = [8, 64], strides = [1, 1]} : vector<8x192xf32> to vector<8x64xf32>
    %114 = arith.mulf %112, %95 : vector<8x64xf32>
    %115 = arith.mulf %111, %110 : vector<8x64xf32>
    %116 = arith.addf %114, %115 : vector<8x64xf32>
    %117 = math.tanh %116 : vector<8x64xf32>
    %118 = arith.mulf %113, %117 : vector<8x64xf32>
    %c2_65 = arith.constant 2 : index
    %c0_66 = arith.constant 0 : index
    %c0_67 = arith.constant 0 : index
    %119 = vector.load %arg8[%c2_65, %c0_66, %c0_67] : memref<8x8x256xf32, #tpu.memory_space<vmem>>, vector<1x8x256xf32>
    %120 = vector.shape_cast %119 : vector<1x8x256xf32> to vector<8x256xf32>
    %121 = arith.truncf %118 : vector<8x64xf32> to vector<8x64xbf16>
    %cst_68 = arith.constant dense<0.000000e+00> : vector<8x256xf32>
    %122 = tpu.matmul %121, %1, %cst_68 {dimension_numbers = #tpu.dot_dimension_numbers<[1], [0], [0], [1], [0, 0, 1, 1], [], []>} : vector<8x64xbf16>, vector<64x256xbf16>, vector<8x256xf32> -> vector<8x256xf32>
    %123 = arith.addf %120, %122 : vector<8x256xf32>
    %124 = vector.extract_strided_slice %123 {offsets = [0, 0], sizes = [8, 192], strides = [1, 1]} : vector<8x256xf32> to vector<8x192xf32>
    %125 = arith.negf %124 : vector<8x192xf32>
    %126 = math.exp %125 : vector<8x192xf32>
    %cst_69 = arith.constant 1.000000e+00 : f32
    %127 = vector.broadcast %cst_69 : f32 to vector<8x192xf32>
    %128 = arith.addf %127, %126 : vector<8x192xf32>
    %129 = arith.divf %127, %128 : vector<8x192xf32>
    %130 = vector.extract_strided_slice %123 {offsets = [0, 192], sizes = [8, 64], strides = [1, 1]} : vector<8x256xf32> to vector<8x64xf32>
    %131 = math.tanh %130 : vector<8x64xf32>
    %132 = vector.extract_strided_slice %129 {offsets = [0, 0], sizes = [8, 64], strides = [1, 1]} : vector<8x192xf32> to vector<8x64xf32>
    %133 = vector.extract_strided_slice %129 {offsets = [0, 64], sizes = [8, 64], strides = [1, 1]} : vector<8x192xf32> to vector<8x64xf32>
    %134 = vector.extract_strided_slice %129 {offsets = [0, 128], sizes = [8, 64], strides = [1, 1]} : vector<8x192xf32> to vector<8x64xf32>
    %135 = arith.mulf %133, %116 : vector<8x64xf32>
    %136 = arith.mulf %132, %131 : vector<8x64xf32>
    %137 = arith.addf %135, %136 : vector<8x64xf32>
    %138 = math.tanh %137 : vector<8x64xf32>
    %139 = arith.mulf %134, %138 : vector<8x64xf32>
    %c3_70 = arith.constant 3 : index
    %c0_71 = arith.constant 0 : index
    %c0_72 = arith.constant 0 : index
    %140 = vector.load %arg8[%c3_70, %c0_71, %c0_72] : memref<8x8x256xf32, #tpu.memory_space<vmem>>, vector<1x8x256xf32>
    %141 = vector.shape_cast %140 : vector<1x8x256xf32> to vector<8x256xf32>
    %142 = arith.truncf %139 : vector<8x64xf32> to vector<8x64xbf16>
    %cst_73 = arith.constant dense<0.000000e+00> : vector<8x256xf32>
    %143 = tpu.matmul %142, %1, %cst_73 {dimension_numbers = #tpu.dot_dimension_numbers<[1], [0], [0], [1], [0, 0, 1, 1], [], []>} : vector<8x64xbf16>, vector<64x256xbf16>, vector<8x256xf32> -> vector<8x256xf32>
    %144 = arith.addf %141, %143 : vector<8x256xf32>
    %145 = vector.extract_strided_slice %144 {offsets = [0, 0], sizes = [8, 192], strides = [1, 1]} : vector<8x256xf32> to vector<8x192xf32>
    %146 = arith.negf %145 : vector<8x192xf32>
    %147 = math.exp %146 : vector<8x192xf32>
    %cst_74 = arith.constant 1.000000e+00 : f32
    %148 = vector.broadcast %cst_74 : f32 to vector<8x192xf32>
    %149 = arith.addf %148, %147 : vector<8x192xf32>
    %150 = arith.divf %148, %149 : vector<8x192xf32>
    %151 = vector.extract_strided_slice %144 {offsets = [0, 192], sizes = [8, 64], strides = [1, 1]} : vector<8x256xf32> to vector<8x64xf32>
    %152 = math.tanh %151 : vector<8x64xf32>
    %153 = vector.extract_strided_slice %150 {offsets = [0, 0], sizes = [8, 64], strides = [1, 1]} : vector<8x192xf32> to vector<8x64xf32>
    %154 = vector.extract_strided_slice %150 {offsets = [0, 64], sizes = [8, 64], strides = [1, 1]} : vector<8x192xf32> to vector<8x64xf32>
    %155 = vector.extract_strided_slice %150 {offsets = [0, 128], sizes = [8, 64], strides = [1, 1]} : vector<8x192xf32> to vector<8x64xf32>
    %156 = arith.mulf %154, %137 : vector<8x64xf32>
    %157 = arith.mulf %153, %152 : vector<8x64xf32>
    %158 = arith.addf %156, %157 : vector<8x64xf32>
    %159 = math.tanh %158 : vector<8x64xf32>
    %160 = arith.mulf %155, %159 : vector<8x64xf32>
    %c4_75 = arith.constant 4 : index
    %c0_76 = arith.constant 0 : index
    %c0_77 = arith.constant 0 : index
    %161 = vector.load %arg8[%c4_75, %c0_76, %c0_77] : memref<8x8x256xf32, #tpu.memory_space<vmem>>, vector<1x8x256xf32>
    %162 = vector.shape_cast %161 : vector<1x8x256xf32> to vector<8x256xf32>
    %163 = arith.truncf %160 : vector<8x64xf32> to vector<8x64xbf16>
    %cst_78 = arith.constant dense<0.000000e+00> : vector<8x256xf32>
    %164 = tpu.matmul %163, %1, %cst_78 {dimension_numbers = #tpu.dot_dimension_numbers<[1], [0], [0], [1], [0, 0, 1, 1], [], []>} : vector<8x64xbf16>, vector<64x256xbf16>, vector<8x256xf32> -> vector<8x256xf32>
    %165 = arith.addf %162, %164 : vector<8x256xf32>
    %166 = vector.extract_strided_slice %165 {offsets = [0, 0], sizes = [8, 192], strides = [1, 1]} : vector<8x256xf32> to vector<8x192xf32>
    %167 = arith.negf %166 : vector<8x192xf32>
    %168 = math.exp %167 : vector<8x192xf32>
    %cst_79 = arith.constant 1.000000e+00 : f32
    %169 = vector.broadcast %cst_79 : f32 to vector<8x192xf32>
    %170 = arith.addf %169, %168 : vector<8x192xf32>
    %171 = arith.divf %169, %170 : vector<8x192xf32>
    %172 = vector.extract_strided_slice %165 {offsets = [0, 192], sizes = [8, 64], strides = [1, 1]} : vector<8x256xf32> to vector<8x64xf32>
    %173 = math.tanh %172 : vector<8x64xf32>
    %174 = vector.extract_strided_slice %171 {offsets = [0, 0], sizes = [8, 64], strides = [1, 1]} : vector<8x192xf32> to vector<8x64xf32>
    %175 = vector.extract_strided_slice %171 {offsets = [0, 64], sizes = [8, 64], strides = [1, 1]} : vector<8x192xf32> to vector<8x64xf32>
    %176 = vector.extract_strided_slice %171 {offsets = [0, 128], sizes = [8, 64], strides = [1, 1]} : vector<8x192xf32> to vector<8x64xf32>
    %177 = arith.mulf %175, %158 : vector<8x64xf32>
    %178 = arith.mulf %174, %173 : vector<8x64xf32>
    %179 = arith.addf %177, %178 : vector<8x64xf32>
    %180 = math.tanh %179 : vector<8x64xf32>
    %181 = arith.mulf %176, %180 : vector<8x64xf32>
    %c5_80 = arith.constant 5 : index
    %c0_81 = arith.constant 0 : index
    %c0_82 = arith.constant 0 : index
    %182 = vector.load %arg8[%c5_80, %c0_81, %c0_82] : memref<8x8x256xf32, #tpu.memory_space<vmem>>, vector<1x8x256xf32>
    %183 = vector.shape_cast %182 : vector<1x8x256xf32> to vector<8x256xf32>
    %184 = arith.truncf %181 : vector<8x64xf32> to vector<8x64xbf16>
    %cst_83 = arith.constant dense<0.000000e+00> : vector<8x256xf32>
    %185 = tpu.matmul %184, %1, %cst_83 {dimension_numbers = #tpu.dot_dimension_numbers<[1], [0], [0], [1], [0, 0, 1, 1], [], []>} : vector<8x64xbf16>, vector<64x256xbf16>, vector<8x256xf32> -> vector<8x256xf32>
    %186 = arith.addf %183, %185 : vector<8x256xf32>
    %187 = vector.extract_strided_slice %186 {offsets = [0, 0], sizes = [8, 192], strides = [1, 1]} : vector<8x256xf32> to vector<8x192xf32>
    %188 = arith.negf %187 : vector<8x192xf32>
    %189 = math.exp %188 : vector<8x192xf32>
    %cst_84 = arith.constant 1.000000e+00 : f32
    %190 = vector.broadcast %cst_84 : f32 to vector<8x192xf32>
    %191 = arith.addf %190, %189 : vector<8x192xf32>
    %192 = arith.divf %190, %191 : vector<8x192xf32>
    %193 = vector.extract_strided_slice %186 {offsets = [0, 192], sizes = [8, 64], strides = [1, 1]} : vector<8x256xf32> to vector<8x64xf32>
    %194 = math.tanh %193 : vector<8x64xf32>
    %195 = vector.extract_strided_slice %192 {offsets = [0, 0], sizes = [8, 64], strides = [1, 1]} : vector<8x192xf32> to vector<8x64xf32>
    %196 = vector.extract_strided_slice %192 {offsets = [0, 64], sizes = [8, 64], strides = [1, 1]} : vector<8x192xf32> to vector<8x64xf32>
    %197 = vector.extract_strided_slice %192 {offsets = [0, 128], sizes = [8, 64], strides = [1, 1]} : vector<8x192xf32> to vector<8x64xf32>
    %198 = arith.mulf %196, %179 : vector<8x64xf32>
    %199 = arith.mulf %195, %194 : vector<8x64xf32>
    %200 = arith.addf %198, %199 : vector<8x64xf32>
    %201 = math.tanh %200 : vector<8x64xf32>
    %202 = arith.mulf %197, %201 : vector<8x64xf32>
    %c6_85 = arith.constant 6 : index
    %c0_86 = arith.constant 0 : index
    %c0_87 = arith.constant 0 : index
    %203 = vector.load %arg8[%c6_85, %c0_86, %c0_87] : memref<8x8x256xf32, #tpu.memory_space<vmem>>, vector<1x8x256xf32>
    %204 = vector.shape_cast %203 : vector<1x8x256xf32> to vector<8x256xf32>
    %205 = arith.truncf %202 : vector<8x64xf32> to vector<8x64xbf16>
    %cst_88 = arith.constant dense<0.000000e+00> : vector<8x256xf32>
    %206 = tpu.matmul %205, %1, %cst_88 {dimension_numbers = #tpu.dot_dimension_numbers<[1], [0], [0], [1], [0, 0, 1, 1], [], []>} : vector<8x64xbf16>, vector<64x256xbf16>, vector<8x256xf32> -> vector<8x256xf32>
    %207 = arith.addf %204, %206 : vector<8x256xf32>
    %208 = vector.extract_strided_slice %207 {offsets = [0, 0], sizes = [8, 192], strides = [1, 1]} : vector<8x256xf32> to vector<8x192xf32>
    %209 = arith.negf %208 : vector<8x192xf32>
    %210 = math.exp %209 : vector<8x192xf32>
    %cst_89 = arith.constant 1.000000e+00 : f32
    %211 = vector.broadcast %cst_89 : f32 to vector<8x192xf32>
    %212 = arith.addf %211, %210 : vector<8x192xf32>
    %213 = arith.divf %211, %212 : vector<8x192xf32>
    %214 = vector.extract_strided_slice %207 {offsets = [0, 192], sizes = [8, 64], strides = [1, 1]} : vector<8x256xf32> to vector<8x64xf32>
    %215 = math.tanh %214 : vector<8x64xf32>
    %216 = vector.extract_strided_slice %213 {offsets = [0, 0], sizes = [8, 64], strides = [1, 1]} : vector<8x192xf32> to vector<8x64xf32>
    %217 = vector.extract_strided_slice %213 {offsets = [0, 64], sizes = [8, 64], strides = [1, 1]} : vector<8x192xf32> to vector<8x64xf32>
    %218 = vector.extract_strided_slice %213 {offsets = [0, 128], sizes = [8, 64], strides = [1, 1]} : vector<8x192xf32> to vector<8x64xf32>
    %219 = arith.mulf %217, %200 : vector<8x64xf32>
    %220 = arith.mulf %216, %215 : vector<8x64xf32>
    %221 = arith.addf %219, %220 : vector<8x64xf32>
    %222 = math.tanh %221 : vector<8x64xf32>
    %223 = arith.mulf %218, %222 : vector<8x64xf32>
    %c7_90 = arith.constant 7 : index
    %c0_91 = arith.constant 0 : index
    %c0_92 = arith.constant 0 : index
    %224 = vector.load %arg8[%c7_90, %c0_91, %c0_92] : memref<8x8x256xf32, #tpu.memory_space<vmem>>, vector<1x8x256xf32>
    %225 = vector.shape_cast %224 : vector<1x8x256xf32> to vector<8x256xf32>
    %226 = arith.truncf %223 : vector<8x64xf32> to vector<8x64xbf16>
    %cst_93 = arith.constant dense<0.000000e+00> : vector<8x256xf32>
    %227 = tpu.matmul %226, %1, %cst_93 {dimension_numbers = #tpu.dot_dimension_numbers<[1], [0], [0], [1], [0, 0, 1, 1], [], []>} : vector<8x64xbf16>, vector<64x256xbf16>, vector<8x256xf32> -> vector<8x256xf32>
    %228 = arith.addf %225, %227 : vector<8x256xf32>
    %229 = vector.extract_strided_slice %228 {offsets = [0, 0], sizes = [8, 192], strides = [1, 1]} : vector<8x256xf32> to vector<8x192xf32>
    %230 = arith.negf %229 : vector<8x192xf32>
    %231 = math.exp %230 : vector<8x192xf32>
    %cst_94 = arith.constant 1.000000e+00 : f32
    %232 = vector.broadcast %cst_94 : f32 to vector<8x192xf32>
    %233 = arith.addf %232, %231 : vector<8x192xf32>
    %234 = arith.divf %232, %233 : vector<8x192xf32>
    %235 = vector.extract_strided_slice %228 {offsets = [0, 192], sizes = [8, 64], strides = [1, 1]} : vector<8x256xf32> to vector<8x64xf32>
    %236 = math.tanh %235 : vector<8x64xf32>
    %237 = vector.extract_strided_slice %234 {offsets = [0, 0], sizes = [8, 64], strides = [1, 1]} : vector<8x192xf32> to vector<8x64xf32>
    %238 = vector.extract_strided_slice %234 {offsets = [0, 64], sizes = [8, 64], strides = [1, 1]} : vector<8x192xf32> to vector<8x64xf32>
    %239 = vector.extract_strided_slice %234 {offsets = [0, 128], sizes = [8, 64], strides = [1, 1]} : vector<8x192xf32> to vector<8x64xf32>
    %240 = arith.mulf %238, %221 : vector<8x64xf32>
    %241 = arith.mulf %237, %236 : vector<8x64xf32>
    %242 = arith.addf %240, %241 : vector<8x64xf32>
    %243 = math.tanh %242 : vector<8x64xf32>
    %244 = arith.mulf %239, %243 : vector<8x64xf32>
    %245 = arith.truncf %244 : vector<8x64xf32> to vector<8x64xbf16>
    %c0_95 = arith.constant 0 : index
    %c0_96 = arith.constant 0 : index
    %246 = vector.load %arg5[%c0_95, %c0_96] : memref<64x128xbf16, #tpu.memory_space<vmem>>, vector<64x128xbf16>
    %cst_97 = arith.constant dense<0.000000e+00> : vector<8x128xf32>
    %247 = tpu.matmul %245, %246, %cst_97 {dimension_numbers = #tpu.dot_dimension_numbers<[1], [0], [0], [1], [0, 0, 1, 1], [], []>} : vector<8x64xbf16>, vector<64x128xbf16>, vector<8x128xf32> -> vector<8x128xf32>
    %c0_98 = arith.constant 0 : index
    %c0_99 = arith.constant 0 : index
    %248 = vector.load %arg6[%c0_98, %c0_99] : memref<1x128xf32, #tpu.memory_space<vmem>>, vector<1x128xf32>
    %249 = vector.broadcast %248 : vector<1x128xf32> to vector<8x128xf32>
    %250 = arith.addf %247, %249 : vector<8x128xf32>
    %c0_100 = arith.constant 0 : index
    %c0_101 = arith.constant 0 : index
    %251 = vector.load %arg7[%c0_100, %c0_101] : memref<8x128xf32, #tpu.memory_space<vmem>>, vector<8x128xf32>
    tpu.vector_store %arg7[%c0_100, %c0_101], %250 {strides = array<i32>} : memref<8x128xf32, #tpu.memory_space<vmem>>, vector<8x128xf32>,
    return
  }
  func.func @transform_0(%arg0: i32) -> (i32, i32, i32) {
    %c0_i32 = arith.constant 0 : i32
    %c0_i32_0 = arith.constant 0 : i32
    %c0_i32_1 = arith.constant 0 : i32
    return %c0_i32, %arg0, %c0_i32_0 : i32, i32, i32
  }
  func.func @transform_1(%arg0: i32) -> (i32, i32) {
    %c0_i32 = arith.constant 0 : i32
    %c0_i32_0 = arith.constant 0 : i32
    %c0_i32_1 = arith.constant 0 : i32
    return %c0_i32, %c0_i32_0 : i32, i32
  }
  func.func @transform_2(%arg0: i32) -> (i32, i32) {
    %c0_i32 = arith.constant 0 : i32
    %c0_i32_0 = arith.constant 0 : i32
    %c0_i32_1 = arith.constant 0 : i32
    return %c0_i32, %c0_i32_0 : i32, i32
  }
  func.func @transform_3(%arg0: i32) -> (i32, i32) {
    %c0_i32 = arith.constant 0 : i32
    %c0_i32_0 = arith.constant 0 : i32
    %c0_i32_1 = arith.constant 0 : i32
    return %c0_i32, %c0_i32_0 : i32, i32
  }
  func.func @transform_4(%arg0: i32) -> (i32, i32) {
    %c0_i32 = arith.constant 0 : i32
    %c0_i32_0 = arith.constant 0 : i32
    %c0_i32_1 = arith.constant 0 : i32
    return %c0_i32, %c0_i32_0 : i32, i32
  }
  func.func @transform_5(%arg0: i32) -> (i32, i32) {
    %c0_i32 = arith.constant 0 : i32
    %c0_i32_0 = arith.constant 0 : i32
    %c0_i32_1 = arith.constant 0 : i32
    return %c0_i32, %c0_i32_0 : i32, i32
  }
  func.func @transform_6(%arg0: i32) -> (i32, i32) {
    %c0_i32 = arith.constant 0 : i32
    %c0_i32_0 = arith.constant 0 : i32
    return %arg0, %c0_i32 : i32, i32
  }
}

</mosaic_0001>

<llo_original>
// kernel: tpu_custom_call.1
$region0: #{tpu_custom_call.1}
  #allocation0 [shape = 'u32[]', space=smem, size = 0x4, offset = 0x4, fixed_abs, tag = 'smem constant byte address 0x4 - core index']
  #allocation1 [shape = 'u32[72,128]{1,0:T(1,128)}', space=vmem, size = 0x9000, scoped, tag = 'internal scratch']
  #allocation2 [shape = 'f32[8,8,256]{2,1,0:T(8,128)}', space=vmem, size = 0x10000, scoped, tag = 'scratch operand']
  %s0 = inlined_call_operand.hbm [shape: f32[8,8,64], index: 0, kind: input, shape index: {}]
  %s1 = inlined_call_operand.hbm [shape: bf16[64,256], index: 1, kind: input, shape index: {}]
  %s2 = inlined_call_operand.hbm [shape: f32[1,256], index: 2, kind: input, shape index: {}]
  %s3 = inlined_call_operand.hbm [shape: bf16[64,256], index: 3, kind: input, shape index: {}]
  %s4 = inlined_call_operand.hbm [shape: bf16[64,128], index: 4, kind: input, shape index: {}]
  %s5 = inlined_call_operand.vmem [shape: f32[1,128], index: 5, kind: input, shape index: {}]
  %s6 = inlined_call_operand.hbm [shape: f32[8,128], index: 6, kind: output, shape index: {}]
  %s7 = sld [smem:[#allocation0]]
  $region54: #{tpu_custom_call.1} parent=0
    _
  %s9 = ssub.s32 1, %s7
  %s10 = scalar_select 0, %s9, %s7
  $region1: #{tpu_custom_call.1} parent=0
    #allocation3 [shape = 'u8[32768]{0}', space=vmem, size = 0x8000, scoped, tag = 'input window, operand 0, single buffered']
    #allocation4 [shape = 's32[1]{0}', space=sflag, size = 0x4, scoped, tag = 'scoped memory for tpu_custom_call.1']
    #allocation5 [shape = 's32[1]{0}', space=sflag, size = 0x4, scoped, tag = 'scoped memory for tpu_custom_call.1']
    #allocation6 [shape = 'u8[32768]{0}', space=vmem, size = 0x8000, scoped, tag = 'input window, operand 1, single buffered']
    #allocation7 [shape = 's32[1]{0}', space=sflag, size = 0x4, scoped, tag = 'scoped memory for tpu_custom_call.1']
    #allocation8 [shape = 'u8[1024]{0}', space=vmem, size = 0x400, scoped, tag = 'input window, operand 2, single buffered']
    #allocation9 [shape = 'u8[32768]{0}', space=vmem, size = 0x8000, scoped, tag = 'input window, operand 3, single buffered']
    #allocation10 [shape = 's32[1]{0}', space=sflag, size = 0x4, scoped, tag = 'scoped memory for tpu_custom_call.1']
    #allocation11 [shape = 'u8[16384]{0}', space=vmem, size = 0x4000, scoped, tag = 'input window, operand 4, single buffered']
    #allocation12 [shape = 'u8[4096]{0}', space=vmem, size = 0x1000, scoped, tag = 'output window, operand 0, single buffered']
    %11 = vsyncpa [#allocation4], 0
    %12 = vsyncpa [#allocation7], 0
    %13 = vsyncpa [#allocation10], 0
    %14 = vsyncpa [#allocation5], 0
    // Predicated region
    $region2: #{tpu_custom_call.1} parent=1 // pred_check
      _
    $region3: #{tpu_custom_call.1} parent=1 // pred_check_branch
      %16 = sbr.rel (0) target = $region5
    $region4: #{tpu_custom_call.1} parent=1 // pred_region
      %18 = vsyncadd [#allocation4], 0
      %s19 = sshll.u32 %s0, 4
      %s20 = int_to_ptr.hbm [resolvable:$true] %s19
      %s21 = sshll.u32 [#allocation3], 4
      %s22 = int_to_ptr.vmem [resolvable:$true] %s21
      %27 = dma.hbm_to_vmem [thread:$0]  %s20, 1024, %s22, [#allocation4], 128, 128, 8
    $region5: #{tpu_custom_call.1} parent=1 // pred_fallthru
      _
    // Predicated region
    $region6: #{tpu_custom_call.1} parent=1 // pred_check
      _
    $region7: #{tpu_custom_call.1} parent=1 // pred_check_branch
      %29 = sbr.rel (0) target = $region9
    $region8: #{tpu_custom_call.1} parent=1 // pred_region
      %31 = vsyncadd [#allocation7], 0
      %s32 = sshll.u32 %s1, 4
      %s33 = int_to_ptr.hbm [resolvable:$true] %s32
      %s34 = sshll.u32 [#allocation6], 4
      %s35 = int_to_ptr.vmem [resolvable:$true] %s34
      %40 = dma.hbm_to_vmem [thread:$0]  %s33, 1024, %s35, [#allocation7], 128, 128, 8
    $region9: #{tpu_custom_call.1} parent=1 // pred_fallthru
      _
    // Predicated region
    $region10: #{tpu_custom_call.1} parent=1 // pred_check
      _
    $region11: #{tpu_custom_call.1} parent=1 // pred_check_branch
      %42 = sbr.rel (0) target = $region13
    $region12: #{tpu_custom_call.1} parent=1 // pred_region
      %44 = vsyncadd [#allocation7], 0
      %s46 = sshll.u32 %s2, 4
      %s47 = int_to_ptr.hbm [resolvable:$true] %s46
      %s48 = sshll.u32 [#allocation8], 4
      %s49 = int_to_ptr.vmem [resolvable:$true] %s48
      %51 = dma.hbm_to_vmem [thread:$0]  %s47, 32, %s49, [#allocation7]
    $region13: #{tpu_custom_call.1} parent=1 // pred_fallthru
      _
    // Predicated region
    $region14: #{tpu_custom_call.1} parent=1 // pred_check
      _
    $region15: #{tpu_custom_call.1} parent=1 // pred_check_branch
      %53 = sbr.rel (0) target = $region17
    $region16: #{tpu_custom_call.1} parent=1 // pred_region
      %55 = vsyncadd [#allocation10], 0
      %s56 = sshll.u32 %s3, 4
      %s57 = int_to_ptr.hbm [resolvable:$true] %s56
      %s58 = sshll.u32 [#allocation9], 4
      %s59 = int_to_ptr.vmem [resolvable:$true] %s58
      %64 = dma.hbm_to_vmem [thread:$0]  %s57, 1024, %s59, [#allocation10], 128, 128, 8
    $region17: #{tpu_custom_call.1} parent=1 // pred_fallthru
      _
    // Predicated region
    $region18: #{tpu_custom_call.1} parent=1 // pred_check
      _
    $region19: #{tpu_custom_call.1} parent=1 // pred_check_branch
      %66 = sbr.rel (0) target = $region21
    $region20: #{tpu_custom_call.1} parent=1 // pred_region
      %68 = vsyncadd [#allocation10], 0
      %s69 = sshll.u32 %s4, 4
      %s70 = int_to_ptr.hbm [resolvable:$true] %s69
      %s71 = sshll.u32 [#allocation11], 4
      %s72 = int_to_ptr.vmem [resolvable:$true] %s71
      %77 = dma.hbm_to_vmem [thread:$0]  %s70, 512, %s72, [#allocation10], 64, 64, 4
    $region21: #{tpu_custom_call.1} parent=1 // pred_fallthru
      _
    // Predicated region
    $region22: #{tpu_custom_call.1} parent=1 // pred_check
      _
    $region23: #{tpu_custom_call.1} parent=1 // pred_check_branch
      %79 = sbr.rel (0) target = $region25
    $region24: #{tpu_custom_call.1} parent=1 // pred_region
      _
    $region25: #{tpu_custom_call.1} parent=1 // pred_fallthru
      _
    // Predicated region
    $region26: #{tpu_custom_call.1} parent=1 // pred_check
      _
    $region27: #{tpu_custom_call.1} parent=1 // pred_check_branch
      %81 = sbr.rel (0) target = $region29
    $region28: #{tpu_custom_call.1} parent=1 // pred_region
      %83 = dma.done [#allocation4], 1024
    $region29: #{tpu_custom_call.1} parent=1 // pred_fallthru
      _
    // Predicated region
    $region30: #{tpu_custom_call.1} parent=1 // pred_check
      _
    $region31: #{tpu_custom_call.1} parent=1 // pred_check_branch
      %85 = sbr.rel (0) target = $region33
    $region32: #{tpu_custom_call.1} parent=1 // pred_region
      %87 = dma.done [#allocation7], 1024
    $region33: #{tpu_custom_call.1} parent=1 // pred_fallthru
      _
    // Predicated region
    $region34: #{tpu_custom_call.1} parent=1 // pred_check
      _
    $region35: #{tpu_custom_call.1} parent=1 // pred_check_branch
      %89 = sbr.rel (0) target = $region37
    $region36: #{tpu_custom_call.1} parent=1 // pred_region
      %91 = dma.done [#allocation7], 32
    $region37: #{tpu_custom_call.1} parent=1 // pred_fallthru
      _
    // Predicated region
    $region38: #{tpu_custom_call.1} parent=1 // pred_check
      _
    $region39: #{tpu_custom_call.1} parent=1 // pred_check_branch
      %93 = sbr.rel (0) target = $region41
    $region40: #{tpu_custom_call.1} parent=1 // pred_region
      %95 = dma.done [#allocation10], 1024
    $region41: #{tpu_custom_call.1} parent=1 // pred_fallthru
      _
    // Predicated region
    $region42: #{tpu_custom_call.1} parent=1 // pred_check
      _
    $region43: #{tpu_custom_call.1} parent=1 // pred_check_branch
      %97 = sbr.rel (0) target = $region45
    $region44: #{tpu_custom_call.1} parent=1 // pred_region
      %99 = dma.done [#allocation10], 512
    $region45: #{tpu_custom_call.1} parent=1 // pred_fallthru
      _
    %v101 = vld [vmem:[#allocation6] sm:$0xff]
    %v102 = vld [vmem:[#allocation6 + $0x8] sm:$0xff]
    %v103 = vld [vmem:[#allocation6 + $0x10] sm:$0xff]
    %v104 = vld [vmem:[#allocation6 + $0x18] sm:$0xff]
    %v105 = vld [vmem:[#allocation6 + $0x20] sm:$0xff]
    %v106 = vld [vmem:[#allocation6 + $0x28] sm:$0xff]
    %v107 = vld [vmem:[#allocation6 + $0x30] sm:$0xff]
    %v108 = vld [vmem:[#allocation6 + $0x38] sm:$0xff]
    %v109 = vld [vmem:[#allocation9] sm:$0xff]
    %v110 = vld [vmem:[#allocation9 + $0x8] sm:$0xff]
    %v111 = vld [vmem:[#allocation9 + $0x10] sm:$0xff]
    %v112 = vld [vmem:[#allocation9 + $0x18] sm:$0xff]
    %v113 = vld [vmem:[#allocation9 + $0x20] sm:$0xff]
    %v114 = vld [vmem:[#allocation9 + $0x28] sm:$0xff]
    %v115 = vld [vmem:[#allocation9 + $0x30] sm:$0xff]
    %v116 = vld [vmem:[#allocation9 + $0x38] sm:$0xff]
    %v117 = vld [vmem:[#allocation8] sm:$0x3]
    %v118 = vld [vmem:[#allocation3] sm:$0xff]
    %v119 = vpack.c.bf16 %v118, %v118
    %v121 = vperm.slane %v117, 0
    %v122 = vperm.slane %v117, 1
    %v133 = vunpack.c.l.b16 %v101
    %v134 = vunpack.c.h.b16 %v101
    %v135 = vunpack.c.l.b16 %v102
    %v136 = vunpack.c.h.b16 %v102
    %v137 = vunpack.c.l.b16 %v103
    %v138 = vunpack.c.h.b16 %v103
    %v139 = vunpack.c.l.b16 %v104
    %v140 = vunpack.c.h.b16 %v104
    %v141 = vunpack.c.l.b16 %v105
    %v142 = vunpack.c.h.b16 %v105
    %v143 = vunpack.c.l.b16 %v106
    %v144 = vunpack.c.h.b16 %v106
    %v145 = vunpack.c.l.b16 %v107
    %v146 = vunpack.c.h.b16 %v107
    %v147 = vunpack.c.l.b16 %v108
    %v148 = vunpack.c.h.b16 %v108
    %v149 = vpack.c.b16 %v135, %v133
    %v150 = vpack.c.b16 %v136, %v134
    %v151 = vpack.c.b16 %v139, %v137
    %v152 = vpack.c.b16 %v140, %v138
    %v153 = vpack.c.b16 %v143, %v141
    %v154 = vpack.c.b16 %v144, %v142
    %v155 = vpack.c.b16 %v147, %v145
    %v156 = vpack.c.b16 %v148, %v146
    %vm165 = vcmask 523264
    %v167 = vsel %vm165, %v119, 0
    %169 = vmatpush.bf16.msra.mxu0 0
    %170 = vmatpush.bf16.msra.mxu0 0
    %171 = vmatpush.bf16.msra.mxu0 0
    %172 = vmatpush.bf16.msra.mxu0 0
    %173 = vmatpush.bf16.msra.mxu0 %v155
    %174 = vmatpush.bf16.msra.mxu0 %v153
    %175 = vmatpush.bf16.msra.mxu0 %v151
    %176 = vmatpush.bf16.msra.mxu0 %v149
    %177 = vmatmul.bf16.gmra.mxu0 %v167
    %v178 = vpop.f32.mrf.mxu0
    %v179 = vadd.f32 %v121, %v178
    %v180 = vpop.f32.mrf.mxu0
    %181 = vdwg.mxu0
    %182 = vmatpush.bf16.msra.mxu0 0
    %183 = vmatpush.bf16.msra.mxu0 0
    %184 = vmatpush.bf16.msra.mxu0 0
    %185 = vmatpush.bf16.msra.mxu0 0
    %186 = vmatpush.bf16.msra.mxu0 %v156
    %187 = vmatpush.bf16.msra.mxu0 %v154
    %188 = vmatpush.bf16.msra.mxu0 %v152
    %189 = vmatpush.bf16.msra.mxu0 %v150
    %190 = vmatmul.bf16.gmra.mxu0 %v167
    %v191 = vpop.f32.mrf.mxu0
    %v192 = vadd.f32 %v122, %v191
    %v193 = vpop.f32.mrf.mxu0
    %194 = vdwg.mxu0
    %195 = vst [vmem:[#allocation2] sm:$0xff] %v179
    %196 = vst [vmem:[#allocation2 + $0x8] sm:$0xff] %v192
    %s197 = scalar_lea.vmem [#allocation3], 8
    %v198 = vld [vmem:[%s197] sm:$0xff]
    %v199 = vpack.c.bf16 %v198, %v198
    %v201 = vsel %vm165, %v199, 0
    %203 = vmatpush.bf16.msra.mxu0 0
    %204 = vmatpush.bf16.msra.mxu0 0
    %205 = vmatpush.bf16.msra.mxu0 0
    %206 = vmatpush.bf16.msra.mxu0 0
    %207 = vmatpush.bf16.msra.mxu0 %v155
    %208 = vmatpush.bf16.msra.mxu0 %v153
    %209 = vmatpush.bf16.msra.mxu0 %v151
    %210 = vmatpush.bf16.msra.mxu0 %v149
    %211 = vmatmul.bf16.gmra.mxu0 %v201
    %v212 = vpop.f32.mrf.mxu0
    %v213 = vadd.f32 %v121, %v212
    %v214 = vpop.f32.mrf.mxu0
    %215 = vdwg.mxu0
    %216 = vmatpush.bf16.msra.mxu0 0
    %217 = vmatpush.bf16.msra.mxu0 0
    %218 = vmatpush.bf16.msra.mxu0 0
    %219 = vmatpush.bf16.msra.mxu0 0
    %220 = vmatpush.bf16.msra.mxu0 %v156
    %221 = vmatpush.bf16.msra.mxu0 %v154
    %222 = vmatpush.bf16.msra.mxu0 %v152
    %223 = vmatpush.bf16.msra.mxu0 %v150
    %224 = vmatmul.bf16.gmra.mxu0 %v201
    %v225 = vpop.f32.mrf.mxu0
    %v226 = vadd.f32 %v122, %v225
    %v227 = vpop.f32.mrf.mxu0
    %228 = vdwg.mxu0
    %s229 = scalar_lea.vmem [#allocation2], 16
    %230 = vst [vmem:[%s229] sm:$0xff] %v213
    %231 = vst [vmem:[%s229 + $0x8] sm:$0xff] %v226
    %s232 = scalar_lea.vmem [#allocation3], 16
    %v233 = vld [vmem:[%s232] sm:$0xff]
    %v234 = vpack.c.bf16 %v233, %v233
    %v236 = vsel %vm165, %v234, 0
    %238 = vmatpush.bf16.msra.mxu0 0
    %239 = vmatpush.bf16.msra.mxu0 0
    %240 = vmatpush.bf16.msra.mxu0 0
    %241 = vmatpush.bf16.msra.mxu0 0
    %242 = vmatpush.bf16.msra.mxu0 %v155
    %243 = vmatpush.bf16.msra.mxu0 %v153
    %244 = vmatpush.bf16.msra.mxu0 %v151
    %245 = vmatpush.bf16.msra.mxu0 %v149
    %246 = vmatmul.bf16.gmra.mxu0 %v236
    %v247 = vpop.f32.mrf.mxu0
    %v248 = vadd.f32 %v121, %v247
    %v249 = vpop.f32.mrf.mxu0
    %250 = vdwg.mxu0
    %251 = vmatpush.bf16.msra.mxu0 0
    %252 = vmatpush.bf16.msra.mxu0 0
    %253 = vmatpush.bf16.msra.mxu0 0
    %254 = vmatpush.bf16.msra.mxu0 0
    %255 = vmatpush.bf16.msra.mxu0 %v156
    %256 = vmatpush.bf16.msra.mxu0 %v154
    %257 = vmatpush.bf16.msra.mxu0 %v152
    %258 = vmatpush.bf16.msra.mxu0 %v150
    %259 = vmatmul.bf16.gmra.mxu0 %v236
    %v260 = vpop.f32.mrf.mxu0
    %v261 = vadd.f32 %v122, %v260
    %v262 = vpop.f32.mrf.mxu0
    %263 = vdwg.mxu0
    %s264 = scalar_lea.vmem [#allocation2], 32
    %265 = vst [vmem:[%s264] sm:$0xff] %v248
    %266 = vst [vmem:[%s264 + $0x8] sm:$0xff] %v261
    %s267 = scalar_lea.vmem [#allocation3], 24
    %v268 = vld [vmem:[%s267] sm:$0xff]
    %v269 = vpack.c.bf16 %v268, %v268
    %v271 = vsel %vm165, %v269, 0
    %273 = vmatpush.bf16.msra.mxu0 0
    %274 = vmatpush.bf16.msra.mxu0 0
    %275 = vmatpush.bf16.msra.mxu0 0
    %276 = vmatpush.bf16.msra.mxu0 0
    %277 = vmatpush.bf16.msra.mxu0 %v155
    %278 = vmatpush.bf16.msra.mxu0 %v153
    %279 = vmatpush.bf16.msra.mxu0 %v151
    %280 = vmatpush.bf16.msra.mxu0 %v149
    %281 = vmatmul.bf16.gmra.mxu0 %v271
    %v282 = vpop.f32.mrf.mxu0
    %v283 = vadd.f32 %v121, %v282
    %v284 = vpop.f32.mrf.mxu0
    %285 = vdwg.mxu0
    %286 = vmatpush.bf16.msra.mxu0 0
    %287 = vmatpush.bf16.msra.mxu0 0
    %288 = vmatpush.bf16.msra.mxu0 0
    %289 = vmatpush.bf16.msra.mxu0 0
    %290 = vmatpush.bf16.msra.mxu0 %v156
    %291 = vmatpush.bf16.msra.mxu0 %v154
    %292 = vmatpush.bf16.msra.mxu0 %v152
    %293 = vmatpush.bf16.msra.mxu0 %v150
    %294 = vmatmul.bf16.gmra.mxu0 %v271
    %v295 = vpop.f32.mrf.mxu0
    %v296 = vadd.f32 %v122, %v295
    %v297 = vpop.f32.mrf.mxu0
    %298 = vdwg.mxu0
    %s299 = scalar_lea.vmem [#allocation2], 48
    %300 = vst [vmem:[%s299] sm:$0xff] %v283
    %301 = vst [vmem:[%s299 + $0x8] sm:$0xff] %v296
    %s302 = scalar_lea.vmem [#allocation3], 32
    %v303 = vld [vmem:[%s302] sm:$0xff]
    %v304 = vpack.c.bf16 %v303, %v303
    %v306 = vsel %vm165, %v304, 0
    %308 = vmatpush.bf16.msra.mxu0 0
    %309 = vmatpush.bf16.msra.mxu0 0
    %310 = vmatpush.bf16.msra.mxu0 0
    %311 = vmatpush.bf16.msra.mxu0 0
    %312 = vmatpush.bf16.msra.mxu0 %v155
    %313 = vmatpush.bf16.msra.mxu0 %v153
    %314 = vmatpush.bf16.msra.mxu0 %v151
    %315 = vmatpush.bf16.msra.mxu0 %v149
    %316 = vmatmul.bf16.gmra.mxu0 %v306
    %v317 = vpop.f32.mrf.mxu0
    %v318 = vadd.f32 %v121, %v317
    %v319 = vpop.f32.mrf.mxu0
    %320 = vdwg.mxu0
    %321 = vmatpush.bf16.msra.mxu0 0
    %322 = vmatpush.bf16.msra.mxu0 0
    %323 = vmatpush.bf16.msra.mxu0 0
    %324 = vmatpush.bf16.msra.mxu0 0
    %325 = vmatpush.bf16.msra.mxu0 %v156
    %326 = vmatpush.bf16.msra.mxu0 %v154
    %327 = vmatpush.bf16.msra.mxu0 %v152
    %328 = vmatpush.bf16.msra.mxu0 %v150
    %329 = vmatmul.bf16.gmra.mxu0 %v306
    %v330 = vpop.f32.mrf.mxu0
    %v331 = vadd.f32 %v122, %v330
    %v332 = vpop.f32.mrf.mxu0
    %333 = vdwg.mxu0
    %s334 = scalar_lea.vmem [#allocation2], 64
    %335 = vst [vmem:[%s334] sm:$0xff] %v318
    %336 = vst [vmem:[%s334 + $0x8] sm:$0xff] %v331
    %s337 = scalar_lea.vmem [#allocation3], 40
    %v338 = vld [vmem:[%s337] sm:$0xff]
    %v339 = vpack.c.bf16 %v338, %v338
    %v341 = vsel %vm165, %v339, 0
    %343 = vmatpush.bf16.msra.mxu0 0
    %344 = vmatpush.bf16.msra.mxu0 0
    %345 = vmatpush.bf16.msra.mxu0 0
    %346 = vmatpush.bf16.msra.mxu0 0
    %347 = vmatpush.bf16.msra.mxu0 %v155
    %348 = vmatpush.bf16.msra.mxu0 %v153
    %349 = vmatpush.bf16.msra.mxu0 %v151
    %350 = vmatpush.bf16.msra.mxu0 %v149
    %351 = vmatmul.bf16.gmra.mxu0 %v341
    %v352 = vpop.f32.mrf.mxu0
    %v353 = vadd.f32 %v121, %v352
    %v354 = vpop.f32.mrf.mxu0
    %355 = vdwg.mxu0
    %356 = vmatpush.bf16.msra.mxu0 0
    %357 = vmatpush.bf16.msra.mxu0 0
    %358 = vmatpush.bf16.msra.mxu0 0
    %359 = vmatpush.bf16.msra.mxu0 0
    %360 = vmatpush.bf16.msra.mxu0 %v156
    %361 = vmatpush.bf16.msra.mxu0 %v154
    %362 = vmatpush.bf16.msra.mxu0 %v152
    %363 = vmatpush.bf16.msra.mxu0 %v150
    %364 = vmatmul.bf16.gmra.mxu0 %v341
    %v365 = vpop.f32.mrf.mxu0
    %v366 = vadd.f32 %v122, %v365
    %v367 = vpop.f32.mrf.mxu0
    %368 = vdwg.mxu0
    %s369 = scalar_lea.vmem [#allocation2], 80
    %370 = vst [vmem:[%s369] sm:$0xff] %v353
    %371 = vst [vmem:[%s369 + $0x8] sm:$0xff] %v366
    %s372 = scalar_lea.vmem [#allocation3], 48
    %v373 = vld [vmem:[%s372] sm:$0xff]
    %v374 = vpack.c.bf16 %v373, %v373
    %v376 = vsel %vm165, %v374, 0
    %378 = vmatpush.bf16.msra.mxu0 0
    %379 = vmatpush.bf16.msra.mxu0 0
    %380 = vmatpush.bf16.msra.mxu0 0
    %381 = vmatpush.bf16.msra.mxu0 0
    %382 = vmatpush.bf16.msra.mxu0 %v155
    %383 = vmatpush.bf16.msra.mxu0 %v153
    %384 = vmatpush.bf16.msra.mxu0 %v151
    %385 = vmatpush.bf16.msra.mxu0 %v149
    %386 = vmatmul.bf16.gmra.mxu0 %v376
    %v387 = vpop.f32.mrf.mxu0
    %v388 = vadd.f32 %v121, %v387
    %v389 = vpop.f32.mrf.mxu0
    %390 = vdwg.mxu0
    %391 = vmatpush.bf16.msra.mxu0 0
    %392 = vmatpush.bf16.msra.mxu0 0
    %393 = vmatpush.bf16.msra.mxu0 0
    %394 = vmatpush.bf16.msra.mxu0 0
    %395 = vmatpush.bf16.msra.mxu0 %v156
    %396 = vmatpush.bf16.msra.mxu0 %v154
    %397 = vmatpush.bf16.msra.mxu0 %v152
    %398 = vmatpush.bf16.msra.mxu0 %v150
    %399 = vmatmul.bf16.gmra.mxu0 %v376
    %v400 = vpop.f32.mrf.mxu0
    %v401 = vadd.f32 %v122, %v400
    %v402 = vpop.f32.mrf.mxu0
    %403 = vdwg.mxu0
    %s404 = scalar_lea.vmem [#allocation2], 96
    %405 = vst [vmem:[%s404] sm:$0xff] %v388
    %406 = vst [vmem:[%s404 + $0x8] sm:$0xff] %v401
    %s407 = scalar_lea.vmem [#allocation3], 56
    %v408 = vld [vmem:[%s407] sm:$0xff]
    %v409 = vpack.c.bf16 %v408, %v408
    %v411 = vsel %vm165, %v409, 0
    %413 = vmatpush.bf16.msra.mxu0 0
    %414 = vmatpush.bf16.msra.mxu0 0
    %415 = vmatpush.bf16.msra.mxu0 0
    %416 = vmatpush.bf16.msra.mxu0 0
    %417 = vmatpush.bf16.msra.mxu0 %v155
    %418 = vmatpush.bf16.msra.mxu0 %v153
    %419 = vmatpush.bf16.msra.mxu0 %v151
    %420 = vmatpush.bf16.msra.mxu0 %v149
    %421 = vmatmul.bf16.gmra.mxu0 %v411
    %v422 = vpop.f32.mrf.mxu0
    %v423 = vadd.f32 %v121, %v422
    %v424 = vpop.f32.mrf.mxu0
    %425 = vdwg.mxu0
    %426 = vmatpush.bf16.msra.mxu0 0
    %427 = vmatpush.bf16.msra.mxu0 0
    %428 = vmatpush.bf16.msra.mxu0 0
    %429 = vmatpush.bf16.msra.mxu0 0
    %430 = vmatpush.bf16.msra.mxu0 %v156
    %431 = vmatpush.bf16.msra.mxu0 %v154
    %432 = vmatpush.bf16.msra.mxu0 %v152
    %433 = vmatpush.bf16.msra.mxu0 %v150
    %434 = vmatmul.bf16.gmra.mxu0 %v411
    %v435 = vpop.f32.mrf.mxu0
    %v436 = vadd.f32 %v122, %v435
    %v437 = vpop.f32.mrf.mxu0
    %438 = vdwg.mxu0
    %s439 = scalar_lea.vmem [#allocation2], 112
    %440 = vst [vmem:[%s439] sm:$0xff] %v423
    %441 = vst [vmem:[%s439 + $0x8] sm:$0xff] %v436
    %v442 = vld [vmem:[#allocation2] sm:$0xff]
    %v443 = vld [vmem:[#allocation2 + $0x8] sm:$0xff]
    %v452 = vunpack.c.l.b16 %v109
    %v453 = vunpack.c.h.b16 %v109
    %v454 = vunpack.c.l.b16 %v110
    %v455 = vunpack.c.h.b16 %v110
    %v456 = vunpack.c.l.b16 %v111
    %v457 = vunpack.c.h.b16 %v111
    %v458 = vunpack.c.l.b16 %v112
    %v459 = vunpack.c.h.b16 %v112
    %v460 = vunpack.c.l.b16 %v113
    %v461 = vunpack.c.h.b16 %v113
    %v462 = vunpack.c.l.b16 %v114
    %v463 = vunpack.c.h.b16 %v114
    %v464 = vunpack.c.l.b16 %v115
    %v465 = vunpack.c.h.b16 %v115
    %v466 = vunpack.c.l.b16 %v116
    %v467 = vunpack.c.h.b16 %v116
    %v468 = vpack.c.b16 %v454, %v452
    %v469 = vpack.c.b16 %v455, %v453
    %v470 = vpack.c.b16 %v458, %v456
    %v471 = vpack.c.b16 %v459, %v457
    %v472 = vpack.c.b16 %v462, %v460
    %v473 = vpack.c.b16 %v463, %v461
    %v474 = vpack.c.b16 %v466, %v464
    %v475 = vpack.c.b16 %v467, %v465
    %v485 = vsel %vm165, 0, 0
    %487 = vmatpush.bf16.msra.mxu0 0
    %488 = vmatpush.bf16.msra.mxu0 0
    %489 = vmatpush.bf16.msra.mxu0 0
    %490 = vmatpush.bf16.msra.mxu0 0
    %491 = vmatpush.bf16.msra.mxu0 %v474
    %492 = vmatpush.bf16.msra.mxu0 %v472
    %493 = vmatpush.bf16.msra.mxu0 %v470
    %494 = vmatpush.bf16.msra.mxu0 %v468
    %495 = vmatmul.bf16.gmra.mxu0 %v485
    %v496 = vpop.f32.mrf.mxu0
    %v497 = vadd.f32 0.0, %v496
    %v498 = vpop.f32.mrf.mxu0
    %499 = vdwg.mxu0
    %500 = vmatpush.bf16.msra.mxu0 0
    %501 = vmatpush.bf16.msra.mxu0 0
    %502 = vmatpush.bf16.msra.mxu0 0
    %503 = vmatpush.bf16.msra.mxu0 0
    %504 = vmatpush.bf16.msra.mxu0 %v475
    %505 = vmatpush.bf16.msra.mxu0 %v473
    %506 = vmatpush.bf16.msra.mxu0 %v471
    %507 = vmatpush.bf16.msra.mxu0 %v469
    %508 = vmatmul.bf16.gmra.mxu0 %v485
    %v509 = vpop.f32.mrf.mxu0
    %v510 = vadd.f32 0.0, %v509
    %v511 = vpop.f32.mrf.mxu0
    %512 = vdwg.mxu0
    %v513 = vadd.f32 %v442, %v497
    %v514 = vadd.f32 %v443, %v510
    %v515 = vxor.u32 %v513, 2147483648
    %v516 = vxor.u32 %v514, 2147483648
    %v517 = vmul.f32 %v515, 1.442695
    %v518 = vpow.pop %v517
    %v519 = vmul.f32 %v516, 1.442695
    %v520 = vpow.pop %v519
    %v521 = vadd.f32 %v518, 1.0
    %v522 = vadd.f32 %v520, 1.0
    %v523 = vrcp.pop %v521
    %v524 = vmul.f32 %v521, %v523
    %v525 = vsub.f32 1.0, %v524
    %v526 = vmul.f32 %v523, %v525
    %v527 = vadd.f32 %v523, %v526
    %vm528 = vweird.f32 %v521
    %vm529 = vweird.f32 %v523
    %vm530 = vmor %vm528, %vm529
    %v531 = vsel %vm530, %v523, %v527
    %v532 = vand.u32 2147483647, %v521
    %vm533 = vcmp.eq.f32.partialorder %v532, 8.507059e+37
    %v534 = vand.u32 %v521, 2147483648
    %v535 = vor.u32 1.1754944e-38, %v534
    %v536 = vsel %vm533, %v535, %v531
    %v537 = vmul.f32 1.0, %v536
    %v538 = vrcp.pop %v522
    %v539 = vmul.f32 %v522, %v538
    %v540 = vsub.f32 1.0, %v539
    %v541 = vmul.f32 %v538, %v540
    %v542 = vadd.f32 %v538, %v541
    %vm543 = vweird.f32 %v522
    %vm544 = vweird.f32 %v538
    %vm545 = vmor %vm543, %vm544
    %v546 = vsel %vm545, %v538, %v542
    %v547 = vand.u32 2147483647, %v522
    %vm548 = vcmp.eq.f32.partialorder %v547, 8.507059e+37
    %v549 = vand.u32 %v522, 2147483648
    %v550 = vor.u32 1.1754944e-38, %v549
    %v551 = vsel %vm548, %v550, %v546
    %v552 = vmul.f32 1.0, %v551
    %v553 = vtanh.pop %v514
    %v554 = vmul.f32 %v537, 0.0
    %556 = vrot.lane.b32.xlu0 %v553, 64
    %v557 = vpop.permute.xlu0 %556
    %v559 = vmul.f32 %v537, %v557
    %561 = vrot.lane.b32.xlu0 %v559, 64
    %v562 = vpop.permute.xlu0 %561
    %v564 = vadd.f32 %v554, %v562
    %v565 = vtanh.pop %v564
    %567 = vrot.lane.b32.xlu0 %v565, 64
    %v568 = vpop.permute.xlu0 %567
    %v570 = vmul.f32 %v552, %v568
    %v571 = vld [vmem:[%s229] sm:$0xff]
    %v572 = vld [vmem:[%s229 + $0x8] sm:$0xff]
    %v573 = vpack.c.bf16 %v570, %v570
    %v575 = vsel %vm165, %v573, 0
    %577 = vmatpush.bf16.msra.mxu0 0
    %578 = vmatpush.bf16.msra.mxu0 0
    %579 = vmatpush.bf16.msra.mxu0 0
    %580 = vmatpush.bf16.msra.mxu0 0
    %581 = vmatpush.bf16.msra.mxu0 %v474
    %582 = vmatpush.bf16.msra.mxu0 %v472
    %583 = vmatpush.bf16.msra.mxu0 %v470
    %584 = vmatpush.bf16.msra.mxu0 %v468
    %585 = vmatmul.bf16.gmra.mxu0 %v575
    %v586 = vpop.f32.mrf.mxu0
    %v587 = vadd.f32 0.0, %v586
    %v588 = vpop.f32.mrf.mxu0
    %589 = vdwg.mxu0
    %590 = vmatpush.bf16.msra.mxu0 0
    %591 = vmatpush.bf16.msra.mxu0 0
    %592 = vmatpush.bf16.msra.mxu0 0
    %593 = vmatpush.bf16.msra.mxu0 0
    %594 = vmatpush.bf16.msra.mxu0 %v475
    %595 = vmatpush.bf16.msra.mxu0 %v473
    %596 = vmatpush.bf16.msra.mxu0 %v471
    %597 = vmatpush.bf16.msra.mxu0 %v469
    %598 = vmatmul.bf16.gmra.mxu0 %v575
    %v599 = vpop.f32.mrf.mxu0
    %v600 = vadd.f32 0.0, %v599
    %v601 = vpop.f32.mrf.mxu0
    %602 = vdwg.mxu0
    %v603 = vadd.f32 %v571, %v587
    %v604 = vadd.f32 %v572, %v600
    %v605 = vxor.u32 %v603, 2147483648
    %v606 = vxor.u32 %v604, 2147483648
    %v607 = vmul.f32 %v605, 1.442695
    %v608 = vpow.pop %v607
    %v609 = vmul.f32 %v606, 1.442695
    %v610 = vpow.pop %v609
    %v611 = vadd.f32 %v608, 1.0
    %v612 = vadd.f32 %v610, 1.0
    %v613 = vrcp.pop %v611
    %v614 = vmul.f32 %v611, %v613
    %v615 = vsub.f32 1.0, %v614
    %v616 = vmul.f32 %v613, %v615
    %v617 = vadd.f32 %v613, %v616
    %vm618 = vweird.f32 %v611
    %vm619 = vweird.f32 %v613
    %vm620 = vmor %vm618, %vm619
    %v621 = vsel %vm620, %v613, %v617
    %v622 = vand.u32 2147483647, %v611
    %vm623 = vcmp.eq.f32.partialorder %v622, 8.507059e+37
    %v624 = vand.u32 %v611, 2147483648
    %v625 = vor.u32 1.1754944e-38, %v624
    %v626 = vsel %vm623, %v625, %v621
    %v627 = vmul.f32 1.0, %v626
    %v628 = vrcp.pop %v612
    %v629 = vmul.f32 %v612, %v628
    %v630 = vsub.f32 1.0, %v629
    %v631 = vmul.f32 %v628, %v630
    %v632 = vadd.f32 %v628, %v631
    %vm633 = vweird.f32 %v612
    %vm634 = vweird.f32 %v628
    %vm635 = vmor %vm633, %vm634
    %v636 = vsel %vm635, %v628, %v632
    %v637 = vand.u32 2147483647, %v612
    %vm638 = vcmp.eq.f32.partialorder %v637, 8.507059e+37
    %v639 = vand.u32 %v612, 2147483648
    %v640 = vor.u32 1.1754944e-38, %v639
    %v641 = vsel %vm638, %v640, %v636
    %v642 = vmul.f32 1.0, %v641
    %v643 = vtanh.pop %v604
    %v644 = vmul.f32 %v627, %v564
    %646 = vrot.lane.b32.xlu0 %v643, 64
    %v647 = vpop.permute.xlu0 %646
    %v649 = vmul.f32 %v627, %v647
    %651 = vrot.lane.b32.xlu0 %v649, 64
    %v652 = vpop.permute.xlu0 %651
    %v654 = vadd.f32 %v644, %v652
    %v655 = vtanh.pop %v654
    %657 = vrot.lane.b32.xlu0 %v655, 64
    %v658 = vpop.permute.xlu0 %657
    %v660 = vmul.f32 %v642, %v658
    %v661 = vld [vmem:[%s264] sm:$0xff]
    %v662 = vld [vmem:[%s264 + $0x8] sm:$0xff]
    %v663 = vpack.c.bf16 %v660, %v660
    %v665 = vsel %vm165, %v663, 0
    %667 = vmatpush.bf16.msra.mxu0 0
    %668 = vmatpush.bf16.msra.mxu0 0
    %669 = vmatpush.bf16.msra.mxu0 0
    %670 = vmatpush.bf16.msra.mxu0 0
    %671 = vmatpush.bf16.msra.mxu0 %v474
    %672 = vmatpush.bf16.msra.mxu0 %v472
    %673 = vmatpush.bf16.msra.mxu0 %v470
    %674 = vmatpush.bf16.msra.mxu0 %v468
    %675 = vmatmul.bf16.gmra.mxu0 %v665
    %v676 = vpop.f32.mrf.mxu0
    %v677 = vadd.f32 0.0, %v676
    %v678 = vpop.f32.mrf.mxu0
    %679 = vdwg.mxu0
    %680 = vmatpush.bf16.msra.mxu0 0
    %681 = vmatpush.bf16.msra.mxu0 0
    %682 = vmatpush.bf16.msra.mxu0 0
    %683 = vmatpush.bf16.msra.mxu0 0
    %684 = vmatpush.bf16.msra.mxu0 %v475
    %685 = vmatpush.bf16.msra.mxu0 %v473
    %686 = vmatpush.bf16.msra.mxu0 %v471
    %687 = vmatpush.bf16.msra.mxu0 %v469
    %688 = vmatmul.bf16.gmra.mxu0 %v665
    %v689 = vpop.f32.mrf.mxu0
    %v690 = vadd.f32 0.0, %v689
    %v691 = vpop.f32.mrf.mxu0
    %692 = vdwg.mxu0
    %v693 = vadd.f32 %v661, %v677
    %v694 = vadd.f32 %v662, %v690
    %v695 = vxor.u32 %v693, 2147483648
    %v696 = vxor.u32 %v694, 2147483648
    %v697 = vmul.f32 %v695, 1.442695
    %v698 = vpow.pop %v697
    %v699 = vmul.f32 %v696, 1.442695
    %v700 = vpow.pop %v699
    %v701 = vadd.f32 %v698, 1.0
    %v702 = vadd.f32 %v700, 1.0
    %v703 = vrcp.pop %v701
    %v704 = vmul.f32 %v701, %v703
    %v705 = vsub.f32 1.0, %v704
    %v706 = vmul.f32 %v703, %v705
    %v707 = vadd.f32 %v703, %v706
    %vm708 = vweird.f32 %v701
    %vm709 = vweird.f32 %v703
    %vm710 = vmor %vm708, %vm709
    %v711 = vsel %vm710, %v703, %v707
    %v712 = vand.u32 2147483647, %v701
    %vm713 = vcmp.eq.f32.partialorder %v712, 8.507059e+37
    %v714 = vand.u32 %v701, 2147483648
    %v715 = vor.u32 1.1754944e-38, %v714
    %v716 = vsel %vm713, %v715, %v711
    %v717 = vmul.f32 1.0, %v716
    %v718 = vrcp.pop %v702
    %v719 = vmul.f32 %v702, %v718
    %v720 = vsub.f32 1.0, %v719
    %v721 = vmul.f32 %v718, %v720
    %v722 = vadd.f32 %v718, %v721
    %vm723 = vweird.f32 %v702
    %vm724 = vweird.f32 %v718
    %vm725 = vmor %vm723, %vm724
    %v726 = vsel %vm725, %v718, %v722
    %v727 = vand.u32 2147483647, %v702
    %vm728 = vcmp.eq.f32.partialorder %v727, 8.507059e+37
    %v729 = vand.u32 %v702, 2147483648
    %v730 = vor.u32 1.1754944e-38, %v729
    %v731 = vsel %vm728, %v730, %v726
    %v732 = vmul.f32 1.0, %v731
    %v733 = vtanh.pop %v694
    %v734 = vmul.f32 %v717, %v654
    %736 = vrot.lane.b32.xlu0 %v733, 64
    %v737 = vpop.permute.xlu0 %736
    %v739 = vmul.f32 %v717, %v737
    %741 = vrot.lane.b32.xlu0 %v739, 64
    %v742 = vpop.permute.xlu0 %741
    %v744 = vadd.f32 %v734, %v742
    %v745 = vtanh.pop %v744
    %747 = vrot.lane.b32.xlu0 %v745, 64
    %v748 = vpop.permute.xlu0 %747
    %v750 = vmul.f32 %v732, %v748
    %v751 = vld [vmem:[%s299] sm:$0xff]
    %v752 = vld [vmem:[%s299 + $0x8] sm:$0xff]
    %v753 = vpack.c.bf16 %v750, %v750
    %v755 = vsel %vm165, %v753, 0
    %757 = vmatpush.bf16.msra.mxu0 0
    %758 = vmatpush.bf16.msra.mxu0 0
    %759 = vmatpush.bf16.msra.mxu0 0
    %760 = vmatpush.bf16.msra.mxu0 0
    %761 = vmatpush.bf16.msra.mxu0 %v474
    %762 = vmatpush.bf16.msra.mxu0 %v472
    %763 = vmatpush.bf16.msra.mxu0 %v470
    %764 = vmatpush.bf16.msra.mxu0 %v468
    %765 = vmatmul.bf16.gmra.mxu0 %v755
    %v766 = vpop.f32.mrf.mxu0
    %v767 = vadd.f32 0.0, %v766
    %v768 = vpop.f32.mrf.mxu0
    %769 = vdwg.mxu0
    %770 = vmatpush.bf16.msra.mxu0 0
    %771 = vmatpush.bf16.msra.mxu0 0
    %772 = vmatpush.bf16.msra.mxu0 0
    %773 = vmatpush.bf16.msra.mxu0 0
    %774 = vmatpush.bf16.msra.mxu0 %v475
    %775 = vmatpush.bf16.msra.mxu0 %v473
    %776 = vmatpush.bf16.msra.mxu0 %v471
    %777 = vmatpush.bf16.msra.mxu0 %v469
    %778 = vmatmul.bf16.gmra.mxu0 %v755
    %v779 = vpop.f32.mrf.mxu0
    %v780 = vadd.f32 0.0, %v779
    %v781 = vpop.f32.mrf.mxu0
    %782 = vdwg.mxu0
    %v783 = vadd.f32 %v751, %v767
    %v784 = vadd.f32 %v752, %v780
    %v785 = vxor.u32 %v783, 2147483648
    %v786 = vxor.u32 %v784, 2147483648
    %v787 = vmul.f32 %v785, 1.442695
    %v788 = vpow.pop %v787
    %v789 = vmul.f32 %v786, 1.442695
    %v790 = vpow.pop %v789
    %v791 = vadd.f32 %v788, 1.0
    %v792 = vadd.f32 %v790, 1.0
    %v793 = vrcp.pop %v791
    %v794 = vmul.f32 %v791, %v793
    %v795 = vsub.f32 1.0, %v794
    %v796 = vmul.f32 %v793, %v795
    %v797 = vadd.f32 %v793, %v796
    %vm798 = vweird.f32 %v791
    %vm799 = vweird.f32 %v793
    %vm800 = vmor %vm798, %vm799
    %v801 = vsel %vm800, %v793, %v797
    %v802 = vand.u32 2147483647, %v791
    %vm803 = vcmp.eq.f32.partialorder %v802, 8.507059e+37
    %v804 = vand.u32 %v791, 2147483648
    %v805 = vor.u32 1.1754944e-38, %v804
    %v806 = vsel %vm803, %v805, %v801
    %v807 = vmul.f32 1.0, %v806
    %v808 = vrcp.pop %v792
    %v809 = vmul.f32 %v792, %v808
    %v810 = vsub.f32 1.0, %v809
    %v811 = vmul.f32 %v808, %v810
    %v812 = vadd.f32 %v808, %v811
    %vm813 = vweird.f32 %v792
    %vm814 = vweird.f32 %v808
    %vm815 = vmor %vm813, %vm814
    %v816 = vsel %vm815, %v808, %v812
    %v817 = vand.u32 2147483647, %v792
    %vm818 = vcmp.eq.f32.partialorder %v817, 8.507059e+37
    %v819 = vand.u32 %v792, 2147483648
    %v820 = vor.u32 1.1754944e-38, %v819
    %v821 = vsel %vm818, %v820, %v816
    %v822 = vmul.f32 1.0, %v821
    %v823 = vtanh.pop %v784
    %v824 = vmul.f32 %v807, %v744
    %826 = vrot.lane.b32.xlu0 %v823, 64
    %v827 = vpop.permute.xlu0 %826
    %v829 = vmul.f32 %v807, %v827
    %831 = vrot.lane.b32.xlu0 %v829, 64
    %v832 = vpop.permute.xlu0 %831
    %v834 = vadd.f32 %v824, %v832
    %v835 = vtanh.pop %v834
    %837 = vrot.lane.b32.xlu0 %v835, 64
    %v838 = vpop.permute.xlu0 %837
    %v840 = vmul.f32 %v822, %v838
    %v841 = vld [vmem:[%s334] sm:$0xff]
    %v842 = vld [vmem:[%s334 + $0x8] sm:$0xff]
    %v843 = vpack.c.bf16 %v840, %v840
    %v845 = vsel %vm165, %v843, 0
    %847 = vmatpush.bf16.msra.mxu0 0
    %848 = vmatpush.bf16.msra.mxu0 0
    %849 = vmatpush.bf16.msra.mxu0 0
    %850 = vmatpush.bf16.msra.mxu0 0
    %851 = vmatpush.bf16.msra.mxu0 %v474
    %852 = vmatpush.bf16.msra.mxu0 %v472
    %853 = vmatpush.bf16.msra.mxu0 %v470
    %854 = vmatpush.bf16.msra.mxu0 %v468
    %855 = vmatmul.bf16.gmra.mxu0 %v845
    %v856 = vpop.f32.mrf.mxu0
    %v857 = vadd.f32 0.0, %v856
    %v858 = vpop.f32.mrf.mxu0
    %859 = vdwg.mxu0
    %860 = vmatpush.bf16.msra.mxu0 0
    %861 = vmatpush.bf16.msra.mxu0 0
    %862 = vmatpush.bf16.msra.mxu0 0
    %863 = vmatpush.bf16.msra.mxu0 0
    %864 = vmatpush.bf16.msra.mxu0 %v475
    %865 = vmatpush.bf16.msra.mxu0 %v473
    %866 = vmatpush.bf16.msra.mxu0 %v471
    %867 = vmatpush.bf16.msra.mxu0 %v469
    %868 = vmatmul.bf16.gmra.mxu0 %v845
    %v869 = vpop.f32.mrf.mxu0
    %v870 = vadd.f32 0.0, %v869
    %v871 = vpop.f32.mrf.mxu0
    %872 = vdwg.mxu0
    %v873 = vadd.f32 %v841, %v857
    %v874 = vadd.f32 %v842, %v870
    %v875 = vxor.u32 %v873, 2147483648
    %v876 = vxor.u32 %v874, 2147483648
    %v877 = vmul.f32 %v875, 1.442695
    %v878 = vpow.pop %v877
    %v879 = vmul.f32 %v876, 1.442695
    %v880 = vpow.pop %v879
    %v881 = vadd.f32 %v878, 1.0
    %v882 = vadd.f32 %v880, 1.0
    %v883 = vrcp.pop %v881
    %v884 = vmul.f32 %v881, %v883
    %v885 = vsub.f32 1.0, %v884
    %v886 = vmul.f32 %v883, %v885
    %v887 = vadd.f32 %v883, %v886
    %vm888 = vweird.f32 %v881
    %vm889 = vweird.f32 %v883
    %vm890 = vmor %vm888, %vm889
    %v891 = vsel %vm890, %v883, %v887
    %v892 = vand.u32 2147483647, %v881
    %vm893 = vcmp.eq.f32.partialorder %v892, 8.507059e+37
    %v894 = vand.u32 %v881, 2147483648
    %v895 = vor.u32 1.1754944e-38, %v894
    %v896 = vsel %vm893, %v895, %v891
    %v897 = vmul.f32 1.0, %v896
    %v898 = vrcp.pop %v882
    %v899 = vmul.f32 %v882, %v898
    %v900 = vsub.f32 1.0, %v899
    %v901 = vmul.f32 %v898, %v900
    %v902 = vadd.f32 %v898, %v901
    %vm903 = vweird.f32 %v882
    %vm904 = vweird.f32 %v898
    %vm905 = vmor %vm903, %vm904
    %v906 = vsel %vm905, %v898, %v902
    %v907 = vand.u32 2147483647, %v882
    %vm908 = vcmp.eq.f32.partialorder %v907, 8.507059e+37
    %v909 = vand.u32 %v882, 2147483648
    %v910 = vor.u32 1.1754944e-38, %v909
    %v911 = vsel %vm908, %v910, %v906
    %v912 = vmul.f32 1.0, %v911
    %v913 = vtanh.pop %v874
    %v914 = vmul.f32 %v897, %v834
    %916 = vrot.lane.b32.xlu0 %v913, 64
    %v917 = vpop.permute.xlu0 %916
    %v919 = vmul.f32 %v897, %v917
    %921 = vrot.lane.b32.xlu0 %v919, 64
    %v922 = vpop.permute.xlu0 %921
    %v924 = vadd.f32 %v914, %v922
    %v925 = vtanh.pop %v924
    %927 = vrot.lane.b32.xlu0 %v925, 64
    %v928 = vpop.permute.xlu0 %927
    %v930 = vmul.f32 %v912, %v928
    %v931 = vld [vmem:[%s369] sm:$0xff]
    %v932 = vld [vmem:[%s369 + $0x8] sm:$0xff]
    %v933 = vpack.c.bf16 %v930, %v930
    %v935 = vsel %vm165, %v933, 0
    %937 = vmatpush.bf16.msra.mxu0 0
    %938 = vmatpush.bf16.msra.mxu0 0
    %939 = vmatpush.bf16.msra.mxu0 0
    %940 = vmatpush.bf16.msra.mxu0 0
    %941 = vmatpush.bf16.msra.mxu0 %v474
    %942 = vmatpush.bf16.msra.mxu0 %v472
    %943 = vmatpush.bf16.msra.mxu0 %v470
    %944 = vmatpush.bf16.msra.mxu0 %v468
    %945 = vmatmul.bf16.gmra.mxu0 %v935
    %v946 = vpop.f32.mrf.mxu0
    %v947 = vadd.f32 0.0, %v946
    %v948 = vpop.f32.mrf.mxu0
    %949 = vdwg.mxu0
    %950 = vmatpush.bf16.msra.mxu0 0
    %951 = vmatpush.bf16.msra.mxu0 0
    %952 = vmatpush.bf16.msra.mxu0 0
    %953 = vmatpush.bf16.msra.mxu0 0
    %954 = vmatpush.bf16.msra.mxu0 %v475
    %955 = vmatpush.bf16.msra.mxu0 %v473
    %956 = vmatpush.bf16.msra.mxu0 %v471
    %957 = vmatpush.bf16.msra.mxu0 %v469
    %958 = vmatmul.bf16.gmra.mxu0 %v935
    %v959 = vpop.f32.mrf.mxu0
    %v960 = vadd.f32 0.0, %v959
    %v961 = vpop.f32.mrf.mxu0
    %962 = vdwg.mxu0
    %v963 = vadd.f32 %v931, %v947
    %v964 = vadd.f32 %v932, %v960
    %v965 = vxor.u32 %v963, 2147483648
    %v966 = vxor.u32 %v964, 2147483648
    %v967 = vmul.f32 %v965, 1.442695
    %v968 = vpow.pop %v967
    %v969 = vmul.f32 %v966, 1.442695
    %v970 = vpow.pop %v969
    %v971 = vadd.f32 %v968, 1.0
    %v972 = vadd.f32 %v970, 1.0
    %v973 = vrcp.pop %v971
    %v974 = vmul.f32 %v971, %v973
    %v975 = vsub.f32 1.0, %v974
    %v976 = vmul.f32 %v973, %v975
    %v977 = vadd.f32 %v973, %v976
    %vm978 = vweird.f32 %v971
    %vm979 = vweird.f32 %v973
    %vm980 = vmor %vm978, %vm979
    %v981 = vsel %vm980, %v973, %v977
    %v982 = vand.u32 2147483647, %v971
    %vm983 = vcmp.eq.f32.partialorder %v982, 8.507059e+37
    %v984 = vand.u32 %v971, 2147483648
    %v985 = vor.u32 1.1754944e-38, %v984
    %v986 = vsel %vm983, %v985, %v981
    %v987 = vmul.f32 1.0, %v986
    %v988 = vrcp.pop %v972
    %v989 = vmul.f32 %v972, %v988
    %v990 = vsub.f32 1.0, %v989
    %v991 = vmul.f32 %v988, %v990
    %v992 = vadd.f32 %v988, %v991
    %vm993 = vweird.f32 %v972
    %vm994 = vweird.f32 %v988
    %vm995 = vmor %vm993, %vm994
    %v996 = vsel %vm995, %v988, %v992
    %v997 = vand.u32 2147483647, %v972
    %vm998 = vcmp.eq.f32.partialorder %v997, 8.507059e+37
    %v999 = vand.u32 %v972, 2147483648
    %v1000 = vor.u32 1.1754944e-38, %v999
    %v1001 = vsel %vm998, %v1000, %v996
    %v1002 = vmul.f32 1.0, %v1001
    %v1003 = vtanh.pop %v964
    %v1004 = vmul.f32 %v987, %v924
    %1006 = vrot.lane.b32.xlu0 %v1003, 64
    %v1007 = vpop.permute.xlu0 %1006
    %v1009 = vmul.f32 %v987, %v1007
    %1011 = vrot.lane.b32.xlu0 %v1009, 64
    %v1012 = vpop.permute.xlu0 %1011
    %v1014 = vadd.f32 %v1004, %v1012
    %v1015 = vtanh.pop %v1014
    %1017 = vrot.lane.b32.xlu0 %v1015, 64
    %v1018 = vpop.permute.xlu0 %1017
    %v1020 = vmul.f32 %v1002, %v1018
    %v1021 = vld [vmem:[%s404] sm:$0xff]
    %v1022 = vld [vmem:[%s404 + $0x8] sm:$0xff]
    %v1023 = vpack.c.bf16 %v1020, %v1020
    %v1025 = vsel %vm165, %v1023, 0
    %1027 = vmatpush.bf16.msra.mxu0 0
    %1028 = vmatpush.bf16.msra.mxu0 0
    %1029 = vmatpush.bf16.msra.mxu0 0
    %1030 = vmatpush.bf16.msra.mxu0 0
    %1031 = vmatpush.bf16.msra.mxu0 %v474
    %1032 = vmatpush.bf16.msra.mxu0 %v472
    %1033 = vmatpush.bf16.msra.mxu0 %v470
    %1034 = vmatpush.bf16.msra.mxu0 %v468
    %1035 = vmatmul.bf16.gmra.mxu0 %v1025
    %v1036 = vpop.f32.mrf.mxu0
    %v1037 = vadd.f32 0.0, %v1036
    %v1038 = vpop.f32.mrf.mxu0
    %1039 = vdwg.mxu0
    %1040 = vmatpush.bf16.msra.mxu0 0
    %1041 = vmatpush.bf16.msra.mxu0 0
    %1042 = vmatpush.bf16.msra.mxu0 0
    %1043 = vmatpush.bf16.msra.mxu0 0
    %1044 = vmatpush.bf16.msra.mxu0 %v475
    %1045 = vmatpush.bf16.msra.mxu0 %v473
    %1046 = vmatpush.bf16.msra.mxu0 %v471
    %1047 = vmatpush.bf16.msra.mxu0 %v469
    %1048 = vmatmul.bf16.gmra.mxu0 %v1025
    %v1049 = vpop.f32.mrf.mxu0
    %v1050 = vadd.f32 0.0, %v1049
    %v1051 = vpop.f32.mrf.mxu0
    %1052 = vdwg.mxu0
    %v1053 = vadd.f32 %v1021, %v1037
    %v1054 = vadd.f32 %v1022, %v1050
    %v1055 = vxor.u32 %v1053, 2147483648
    %v1056 = vxor.u32 %v1054, 2147483648
    %v1057 = vmul.f32 %v1055, 1.442695
    %v1058 = vpow.pop %v1057
    %v1059 = vmul.f32 %v1056, 1.442695
    %v1060 = vpow.pop %v1059
    %v1061 = vadd.f32 %v1058, 1.0
    %v1062 = vadd.f32 %v1060, 1.0
    %v1063 = vrcp.pop %v1061
    %v1064 = vmul.f32 %v1061, %v1063
    %v1065 = vsub.f32 1.0, %v1064
    %v1066 = vmul.f32 %v1063, %v1065
    %v1067 = vadd.f32 %v1063, %v1066
    %vm1068 = vweird.f32 %v1061
    %vm1069 = vweird.f32 %v1063
    %vm1070 = vmor %vm1068, %vm1069
    %v1071 = vsel %vm1070, %v1063, %v1067
    %v1072 = vand.u32 2147483647, %v1061
    %vm1073 = vcmp.eq.f32.partialorder %v1072, 8.507059e+37
    %v1074 = vand.u32 %v1061, 2147483648
    %v1075 = vor.u32 1.1754944e-38, %v1074
    %v1076 = vsel %vm1073, %v1075, %v1071
    %v1077 = vmul.f32 1.0, %v1076
    %v1078 = vrcp.pop %v1062
    %v1079 = vmul.f32 %v1062, %v1078
    %v1080 = vsub.f32 1.0, %v1079
    %v1081 = vmul.f32 %v1078, %v1080
    %v1082 = vadd.f32 %v1078, %v1081
    %vm1083 = vweird.f32 %v1062
    %vm1084 = vweird.f32 %v1078
    %vm1085 = vmor %vm1083, %vm1084
    %v1086 = vsel %vm1085, %v1078, %v1082
    %v1087 = vand.u32 2147483647, %v1062
    %vm1088 = vcmp.eq.f32.partialorder %v1087, 8.507059e+37
    %v1089 = vand.u32 %v1062, 2147483648
    %v1090 = vor.u32 1.1754944e-38, %v1089
    %v1091 = vsel %vm1088, %v1090, %v1086
    %v1092 = vmul.f32 1.0, %v1091
    %v1093 = vtanh.pop %v1054
    %v1094 = vmul.f32 %v1077, %v1014
    %1096 = vrot.lane.b32.xlu0 %v1093, 64
    %v1097 = vpop.permute.xlu0 %1096
    %v1099 = vmul.f32 %v1077, %v1097
    %1101 = vrot.lane.b32.xlu0 %v1099, 64
    %v1102 = vpop.permute.xlu0 %1101
    %v1104 = vadd.f32 %v1094, %v1102
    %v1105 = vtanh.pop %v1104
    %1107 = vrot.lane.b32.xlu0 %v1105, 64
    %v1108 = vpop.permute.xlu0 %1107
    %v1110 = vmul.f32 %v1092, %v1108
    %v1111 = vld [vmem:[%s439] sm:$0xff]
    %v1112 = vld [vmem:[%s439 + $0x8] sm:$0xff]
    %v1113 = vpack.c.bf16 %v1110, %v1110
    %v1115 = vsel %vm165, %v1113, 0
    %1117 = vmatpush.bf16.msra.mxu0 0
    %1118 = vmatpush.bf16.msra.mxu0 0
    %1119 = vmatpush.bf16.msra.mxu0 0
    %1120 = vmatpush.bf16.msra.mxu0 0
    %1121 = vmatpush.bf16.msra.mxu0 %v474
    %1122 = vmatpush.bf16.msra.mxu0 %v472
    %1123 = vmatpush.bf16.msra.mxu0 %v470
    %1124 = vmatpush.bf16.msra.mxu0 %v468
    %1125 = vmatmul.bf16.gmra.mxu0 %v1115
    %v1126 = vpop.f32.mrf.mxu0
    %v1127 = vadd.f32 0.0, %v1126
    %v1128 = vpop.f32.mrf.mxu0
    %1129 = vdwg.mxu0
    %1130 = vmatpush.bf16.msra.mxu0 0
    %1131 = vmatpush.bf16.msra.mxu0 0
    %1132 = vmatpush.bf16.msra.mxu0 0
    %1133 = vmatpush.bf16.msra.mxu0 0
    %1134 = vmatpush.bf16.msra.mxu0 %v475
    %1135 = vmatpush.bf16.msra.mxu0 %v473
    %1136 = vmatpush.bf16.msra.mxu0 %v471
    %1137 = vmatpush.bf16.msra.mxu0 %v469
    %1138 = vmatmul.bf16.gmra.mxu0 %v1115
    %v1139 = vpop.f32.mrf.mxu0
    %v1140 = vadd.f32 0.0, %v1139
    %v1141 = vpop.f32.mrf.mxu0
    %1142 = vdwg.mxu0
    %v1143 = vadd.f32 %v1111, %v1127
    %v1144 = vadd.f32 %v1112, %v1140
    %v1145 = vxor.u32 %v1143, 2147483648
    %v1146 = vxor.u32 %v1144, 2147483648
    %v1147 = vmul.f32 %v1145, 1.442695
    %v1148 = vpow.pop %v1147
    %v1149 = vmul.f32 %v1146, 1.442695
    %v1150 = vpow.pop %v1149
    %v1151 = vadd.f32 %v1148, 1.0
    %v1152 = vadd.f32 %v1150, 1.0
    %v1153 = vrcp.pop %v1151
    %v1154 = vmul.f32 %v1151, %v1153
    %v1155 = vsub.f32 1.0, %v1154
    %v1156 = vmul.f32 %v1153, %v1155
    %v1157 = vadd.f32 %v1153, %v1156
    %vm1158 = vweird.f32 %v1151
    %vm1159 = vweird.f32 %v1153
    %vm1160 = vmor %vm1158, %vm1159
    %v1161 = vsel %vm1160, %v1153, %v1157
    %v1162 = vand.u32 2147483647, %v1151
    %vm1163 = vcmp.eq.f32.partialorder %v1162, 8.507059e+37
    %v1164 = vand.u32 %v1151, 2147483648
    %v1165 = vor.u32 1.1754944e-38, %v1164
    %v1166 = vsel %vm1163, %v1165, %v1161
    %v1167 = vmul.f32 1.0, %v1166
    %v1168 = vrcp.pop %v1152
    %v1169 = vmul.f32 %v1152, %v1168
    %v1170 = vsub.f32 1.0, %v1169
    %v1171 = vmul.f32 %v1168, %v1170
    %v1172 = vadd.f32 %v1168, %v1171
    %vm1173 = vweird.f32 %v1152
    %vm1174 = vweird.f32 %v1168
    %vm1175 = vmor %vm1173, %vm1174
    %v1176 = vsel %vm1175, %v1168, %v1172
    %v1177 = vand.u32 2147483647, %v1152
    %vm1178 = vcmp.eq.f32.partialorder %v1177, 8.507059e+37
    %v1179 = vand.u32 %v1152, 2147483648
    %v1180 = vor.u32 1.1754944e-38, %v1179
    %v1181 = vsel %vm1178, %v1180, %v1176
    %v1182 = vmul.f32 1.0, %v1181
    %v1183 = vtanh.pop %v1144
    %v1184 = vmul.f32 %v1167, %v1104
    %1186 = vrot.lane.b32.xlu0 %v1183, 64
    %v1187 = vpop.permute.xlu0 %1186
    %v1189 = vmul.f32 %v1167, %v1187
    %1191 = vrot.lane.b32.xlu0 %v1189, 64
    %v1192 = vpop.permute.xlu0 %1191
    %v1194 = vadd.f32 %v1184, %v1192
    %v1195 = vtanh.pop %v1194
    %1197 = vrot.lane.b32.xlu0 %v1195, 64
    %v1198 = vpop.permute.xlu0 %1197
    %v1200 = vmul.f32 %v1182, %v1198
    %v1201 = vpack.c.bf16 %v1200, %v1200
    %v1202 = vld [vmem:[#allocation11] sm:$0xf]
    %v1203 = vld [vmem:[#allocation11 + $0x4] sm:$0xf]
    %v1204 = vld [vmem:[#allocation11 + $0x8] sm:$0xf]
    %v1205 = vld [vmem:[#allocation11 + $0xc] sm:$0xf]
    %v1206 = vld [vmem:[#allocation11 + $0x10] sm:$0xf]
    %v1207 = vld [vmem:[#allocation11 + $0x14] sm:$0xf]
    %v1208 = vld [vmem:[#allocation11 + $0x18] sm:$0xf]
    %v1209 = vld [vmem:[#allocation11 + $0x1c] sm:$0xf]
    %v1210 = vld [vmem:[%s5] sm:$0x1]
    %v1212 = vperm.slane %v1210, 0
    %v1222 = vunpack.c.l.b16 %v1202
    %v1223 = vunpack.c.l.b16 %v1203
    %v1224 = vunpack.c.l.b16 %v1204
    %v1225 = vunpack.c.l.b16 %v1205
    %v1226 = vunpack.c.l.b16 %v1206
    %v1227 = vunpack.c.l.b16 %v1207
    %v1228 = vunpack.c.l.b16 %v1208
    %v1229 = vunpack.c.l.b16 %v1209
    %v1230 = vpack.c.b16 %v1223, %v1222
    %v1231 = vpack.c.b16 %v1225, %v1224
    %v1232 = vpack.c.b16 %v1227, %v1226
    %v1233 = vpack.c.b16 %v1229, %v1228
    %v1239 = vsel %vm165, %v1201, 0
    %1241 = vmatpush.bf16.msra.mxu0 0
    %1242 = vmatpush.bf16.msra.mxu0 0
    %1243 = vmatpush.bf16.msra.mxu0 0
    %1244 = vmatpush.bf16.msra.mxu0 0
    %1245 = vmatpush.bf16.msra.mxu0 %v1233
    %1246 = vmatpush.bf16.msra.mxu0 %v1232
    %1247 = vmatpush.bf16.msra.mxu0 %v1231
    %1248 = vmatpush.bf16.msra.mxu0 %v1230
    %1249 = vmatmul.bf16.gmra.mxu0 %v1239
    %v1250 = vpop.f32.mrf.mxu0
    %v1251 = vadd.f32 %v1212, %v1250
    %v1252 = vpop.f32.mrf.mxu0
    %1253 = vdwg.mxu0
    %1254 = vst [vmem:[#allocation12] sm:$0xff] %v1251
    // Predicated region
    $region46: #{tpu_custom_call.1} parent=1 // pred_check
      _
    $region47: #{tpu_custom_call.1} parent=1 // pred_check_branch
      %1256 = sbr.rel (0) target = $region49
    $region48: #{tpu_custom_call.1} parent=1 // pred_region
      %1258 = vsyncadd [#allocation5], 0
      %s1260 = sshll.u32 [#allocation12], 4
      %s1261 = int_to_ptr.vmem [resolvable:$true] %s1260
      %s1262 = sshll.u32 %s6, 4
      %s1263 = int_to_ptr.hbm [resolvable:$true] %s1262
      %1265 = dma.vmem_to_hbm [thread:$0]  %s1261, 128, %s1263, [#allocation5]
    $region49: #{tpu_custom_call.1} parent=1 // pred_fallthru
      _
    // Predicated region
    $region50: #{tpu_custom_call.1} parent=1 // pred_check
      _
    $region51: #{tpu_custom_call.1} parent=1 // pred_check_branch
      %1267 = sbr.rel (0) target = $region53
    $region52: #{tpu_custom_call.1} parent=1 // pred_region
      %1269 = dma.done [#allocation5], 128
    $region53: #{tpu_custom_call.1} parent=1 // pred_fallthru
      _
    %1270 = vsyncpa [#allocation4], 1
    %1271 = vsyncpa [#allocation7], 1
    %1272 = vsyncpa [#allocation10], 1
    %1273 = vsyncpa [#allocation5], 1

</llo_original>
